<compile_context>
chip_gen: v5e
topology: v5e:2x2
jax: 0.10.0
libtpu: 0.0.40
codegen_flags: <defaults>
</compile_context>

<pallas_src>
import math
import functools

import jax
import jax.numpy as jnp
from jax.experimental import pallas as pl
from jax.experimental.pallas import tpu as pltpu


# ----------------- Kernel A: fused QKV projection + RoPE epilogue ----------
def _qkv_proj_kernel(x_ref, w_ref, cos_ref, sin_ref, o_ref, *,
                     n_rope_tiles, head_dim, heads_per_tile):
    # x_ref: (1, blk_a, D) bf16   w_ref: (D, tn) bf16
    # cos_ref/sin_ref: (blk_a, head_dim) f32   o_ref: (1, blk_a, tn) bf16
    acc = jnp.dot(x_ref[0], w_ref[...], preferred_element_type=jnp.float32)
    j = pl.program_id(2)
    half = head_dim // 2

    @pl.when(j < n_rope_tiles)          # Q and K column tiles: apply RoPE
    def _rope():
        cos = cos_ref[...]
        sin = sin_ref[...]
        parts = []
        for t in range(heads_per_tile):             # static unroll, head-aligned
            a = acc[:, t * head_dim:(t + 1) * head_dim]
            parts.append(a * cos + pltpu.roll(a, half, 1) * sin)
        o_ref[0] = jnp.concatenate(parts, axis=-1).astype(o_ref.dtype)

    @pl.when(j >= n_rope_tiles)         # V column tiles: plain store
    def _plain():
        o_ref[0] = acc.astype(o_ref.dtype)


# --------------- Kernel B: flash attention + fused Wo projection -----------
def _flash_attn_kernel(q_ref, k_ref, v_ref, bias_ref, wo_ref, o_ref,
                       m_scr, l_scr, acc_scr, ctx_scr, *, num_heads, blk_k):
    h = pl.program_id(2)
    kv = pl.program_id(3)
    n_kv = pl.num_programs(3)

    @pl.when(kv == 0)
    def _init_head():
        m_scr[...] = jnp.full_like(m_scr, -jnp.inf)
        l_scr[...] = jnp.zeros_like(l_scr)
        acc_scr[...] = jnp.zeros_like(acc_scr)

    # Q/K already scaled (Wq) and rotated (Kernel A); bf16 MXU operands,
    # f32 accumulation, contraction on last dims (no materialized K^T).
    s = jax.lax.dot_general(
        q_ref[0], k_ref[0],
        dimension_numbers=(((1,), (1,)), ((), ())),
        preferred_element_type=jnp.float32)

    # Padding-mask bias: block-resident (1,1,S) per batch, slice the kv window.
    kv_start = pl.multiple_of(kv * blk_k, blk_k)
    s = s + bias_ref[0, :, pl.ds(kv_start, blk_k)]          # (1, blk_k) bcast

    # Online softmax (f32 stats).
    m_prev = m_scr[...]
    m_new = jnp.maximum(m_prev, jnp.max(s, axis=-1, keepdims=True))
    alpha = jnp.exp(m_prev - m_new)
    p = jnp.exp(s - m_new)
    l_scr[...] = alpha * l_scr[...] + jnp.sum(p, axis=-1, keepdims=True)
    acc_scr[...] = alpha * acc_scr[...] + jnp.dot(
        p.astype(jnp.bfloat16), v_ref[0], preferred_element_type=jnp.float32)
    m_scr[...] = m_new

    @pl.when(kv == n_kv - 1)
    def _finalize_head():
        ctx = acc_scr[...] / l_scr[...]            # exact normalization
        ctx_scr[h] = ctx.astype(jnp.bfloat16)      # stash this head's context

    @pl.when(jnp.logical_and(kv == n_kv - 1, h == num_heads - 1))
    def _project():
        # One full-depth (blk_q, D) x (D, D) Wo matmul for all heads.
        # TODO(synk): stream Wo in K-slices for very large d_model instead of
        # keeping the full (D, D) bf16 block resident in VMEM.
        ctx_full = jnp.concatenate(
            [ctx_scr[t] for t in range(num_heads)], axis=-1)
        o_ref[0] = jnp.dot(ctx_full, wo_ref[...],
                           preferred_element_type=jnp.float32).astype(o_ref.dtype)


# ------------------------------ wrapper ------------------------------------
def multi_head_self_attention(x, attn_mask, wq, wk, wv, wo, num_heads,
                              base=10000.0):
    """x: (B, S, D); attn_mask: (B, S) bool (True = padding) or None.
    wq/wk/wv/wo: nn.Linear-style (out, in) weight matrices."""
    B, S, D = x.shape
    assert D % num_heads == 0
    hd = D // num_heads
    half = hd // 2
    out_dtype = x.dtype
    H = num_heads

    assert D % 128 == 0, "d_model must be a multiple of 128 (TPU lane width)"
    assert hd % 128 == 0, "head_dim must be a multiple of 128"
    assert S % 128 == 0, "seq_len must be a multiple of 128"
    # TODO(synk): support head_dim < 128 / ragged S via packing + masked tiles.

    # ---- tile selection -----------------------------------------------------
    blk_a = 256 if S % 256 == 0 else 128       # Kernel A seq tile
    blk_q = 256 if S % 256 == 0 else 128       # Kernel B query tile
    blk_k = 256 if S % 256 == 0 else 128       # Kernel B key/value tile
    n_sa, n_q, n_kv = S // blk_a, S // blk_q, S // blk_k

    tn = hd                                    # Kernel A output-column tile
    for cand in (512, 256):
        if cand >= hd and cand % hd == 0 and D % cand == 0:
            tn = cand
            break
    n_tn = (3 * D) // tn
    n_rope = (2 * D) // tn                     # Q+K column tiles get RoPE
    heads_per_tile = tn // hd

    # ---- weight prep (all folding done once, wrapper-side) -----------------
    # Per-head de-interleave of Q/K output channels ([evens, odds] per head):
    # logits are invariant to a consistent per-head channel permutation of Q/K,
    # and interleaved RoPE becomes rotate-half == one lane roll.
    deint = jnp.concatenate([jnp.arange(0, hd, 2), jnp.arange(1, hd, 2)])
    perm = (jnp.arange(H)[:, None] * hd + deint[None, :]).reshape(-1)

    scale = 1.0 / math.sqrt(hd)
    wq_t = (wq.T * scale)[:, perm]             # softmax scale folded into Wq
    wk_t = wk.T[:, perm]
    wv_t = wv.T
    w_qkv = jnp.concatenate([wq_t, wk_t, wv_t], axis=1).astype(jnp.bfloat16)
    wo_t = wo.T.astype(jnp.bfloat16)           # (D, D)

    x_bf = x.astype(jnp.bfloat16)

    # ---- RoPE tables: (S, head_dim) f32 -------------------------------------
    pos = jnp.arange(S, dtype=jnp.float32)[:, None]
    freq = base ** (-2.0 * jnp.arange(half, dtype=jnp.float32) / hd)
    angle = pos * freq[None, :]                                  # (S, half)
    cos_t = jnp.concatenate([jnp.cos(angle), jnp.cos(angle)], axis=-1)
    sin_t = jnp.concatenate([-jnp.sin(angle), jnp.sin(angle)], axis=-1)

    # ---- padding mask as an additive bias (0 / -1e9) ------------------------
    if attn_mask is None:
        bias = jnp.zeros((B, 1, S), jnp.float32)
    else:
        bias = jnp.where(attn_mask, -1e9, 0.0).astype(jnp.float32)[:, None, :]

    # ---- Kernel A: fused QKV projection + RoPE ------------------------------
    qkv = pl.pallas_call(
        functools.partial(_qkv_proj_kernel, n_rope_tiles=n_rope,
                          head_dim=hd, heads_per_tile=heads_per_tile),
        grid=(B, n_sa, n_tn),
        in_specs=[
            pl.BlockSpec((1, blk_a, D), lambda b, i, j: (b, i, 0)),   # x tile
            pl.BlockSpec((D, tn), lambda b, i, j: (0, j)),            # weight slab
            pl.BlockSpec((blk_a, hd), lambda b, i, j: (i, 0)),        # cos
            pl.BlockSpec((blk_a, hd), lambda b, i, j: (i, 0)),        # sin
        ],
        out_specs=pl.BlockSpec((1, blk_a, tn), lambda b, i, j: (b, i, j)),
        out_shape=jax.ShapeDtypeStruct((B, S, 3 * D), jnp.bfloat16),
        compiler_params=pltpu.CompilerParams(
            dimension_semantics=("parallel", "parallel", "arbitrary")),
    )(x_bf, w_qkv, cos_t, sin_t)

    # ---- Kernel B: flash attention + fused output projection ----------------
    kernel = functools.partial(_flash_attn_kernel, num_heads=H, blk_k=blk_k)
    out = pl.pallas_call(
        kernel,
        grid=(B, n_q, H, n_kv),
        in_specs=[
            pl.BlockSpec((1, blk_q, hd), lambda b, qi, h, kv: (b, qi, h)),          # Q head
            pl.BlockSpec((1, blk_k, hd), lambda b, qi, h, kv: (b, kv, H + h)),      # K head
            pl.BlockSpec((1, blk_k, hd), lambda b, qi, h, kv: (b, kv, 2 * H + h)),  # V head
            pl.BlockSpec((1, 1, S), lambda b, qi, h, kv: (b, 0, 0)),                # mask bias (resident)
            pl.BlockSpec((D, D), lambda b, qi, h, kv: (0, 0)),                      # Wo^T (resident)
        ],
        out_specs=pl.BlockSpec((1, blk_q, D), lambda b, qi, h, kv: (b, qi, 0)),
        out_shape=jax.ShapeDtypeStruct((B, S, D), out_dtype),
        scratch_shapes=[
            pltpu.VMEM((blk_q, 1), jnp.float32),        # running max
            pltpu.VMEM((blk_q, 1), jnp.float32),        # running sum
            pltpu.VMEM((blk_q, hd), jnp.float32),       # per-head context acc
            pltpu.VMEM((H, blk_q, hd), jnp.bfloat16),   # per-head ctx stash
        ],
        compiler_params=pltpu.CompilerParams(
            dimension_semantics=("parallel", "parallel", "arbitrary", "arbitrary")),
    )(qkv, qkv, qkv, bias, wo_t)
    return out


# ---------------- pure-JAX reference (mirrors the PyTorch module) -----------
def _rope_ref(x, base=10000.0):
    b, s, nh, hd = x.shape
    half = hd // 2
    pos = jnp.arange(s, dtype=x.dtype)[:, None]
    freq = (base ** (-2.0 * jnp.arange(half, dtype=x.dtype) / hd))[None, :]
    angle = pos * freq
    sin = jnp.sin(angle).reshape(1, s, 1, half)
    cos = jnp.cos(angle).reshape(1, s, 1, half)
    x0 = x[..., 0::2]
    x1 = x[..., 1::2]
    rx0 = x0 * cos - x1 * sin
    rx1 = x1 * cos + x0 * sin
    out = jnp.zeros_like(x)
    out = out.at[..., 0::2].set(rx0)
    out = out.at[..., 1::2].set(rx1)
    return out


def _mhsa_ref(x, attn_mask, wq, wk, wv, wo, num_heads):
    """Same math as the PyTorch module; matmul operands cast to bf16 with f32
    accumulation to mirror the kernel's MXU precision strategy."""
    B, S, D = x.shape
    hd = D // num_heads
    bf16, f32 = jnp.bfloat16, jnp.float32
    scale = 1.0 / math.sqrt(hd)

    def mm(a_bf, b_bf):
        return jnp.dot(a_bf, b_bf, preferred_element_type=f32)

    x_bf = x.astype(bf16)
    q = mm(x_bf, (wq.T * scale).astype(bf16)).reshape(B, S, num_heads, hd)
    k = mm(x_bf, wk.T.astype(bf16)).reshape(B, S, num_heads, hd)
    v = mm(x_bf, wv.T.astype(bf16)).reshape(B, S, num_heads, hd)
    q = _rope_ref(q)                                    # f32 (scale folded)
    k = _rope_ref(k)
    q_ = q.transpose(0, 2, 1, 3).astype(bf16)
    k_ = k.transpose(0, 2, 1, 3).astype(bf16)
    logits = jnp.einsum("bhqd,bhkd->bhqk", q_, k_, preferred_element_type=f32)
    if attn_mask is not None:
        logits = jnp.where(attn_mask[:, None, None, :], -1e9, logits)
    w = jax.nn.softmax(logits, axis=-1)
    v_ = v.transpose(0, 2, 1, 3).astype(bf16)
    ctx = jnp.einsum("bhqk,bhkd->bhqd", w.astype(bf16), v_,
                     preferred_element_type=f32)
    ctx = ctx.transpose(0, 2, 1, 3).reshape(B, S, D)
    return mm(ctx.astype(bf16), wo.T.astype(bf16))


if __name__ == "__main__":
    B, S, D, H = 2, 512, 256, 2          # head_dim = 128 (lane-aligned)
    key = jax.random.PRNGKey(0)
    kx, kq, kk, kv_key, ko = jax.random.split(key, 5)

    x = jax.random.normal(kx, (B, S, D), dtype=jnp.float32)
    bound = 1.0 / math.sqrt(D)
    wq = jax.random.uniform(kq, (D, D), jnp.float32, -bound, bound)
    wk = jax.random.uniform(kk, (D, D), jnp.float32, -bound, bound)
    wv = jax.random.uniform(kv_key, (D, D), jnp.float32, -bound, bound)
    wo = jax.random.uniform(ko, (D, D), jnp.float32, -bound, bound)

    # padding mask: last 64 positions of batch 1 are padding
    attn_mask = jnp.zeros((B, S), dtype=bool).at[1, -64:].set(True)

    out = jax.block_until_ready(
        multi_head_self_attention(x, attn_mask, wq, wk, wv, wo, H))

    ref = _mhsa_ref(x, attn_mask, wq, wk, wv, wo, H)
    assert out.shape == (B, S, D)
    err = jnp.max(jnp.abs(out - ref))
    assert jnp.allclose(out, ref, atol=5e-3, rtol=5e-3), f"max abs diff {err}"
    print("KERNEL_OK")
</pallas_src>

<mosaic_0001>
module attributes {stable_mosaic.version = 11 : i64} {
  func.func @_qkv_proj_kernel(%arg0: i32, %arg1: i32, %arg2: i32, %arg3: memref<1x256x256xbf16, #tpu.memory_space<vmem>>, %arg4: memref<256x256xbf16, #tpu.memory_space<vmem>>, %arg5: memref<256x128xf32, #tpu.memory_space<vmem>>, %arg6: memref<256x128xf32, #tpu.memory_space<vmem>>, %arg7: memref<1x256x256xbf16, #tpu.memory_space<vmem>>) attributes {dimension_semantics = [#tpu.dimension_semantics<parallel>, #tpu.dimension_semantics<parallel>, #tpu.dimension_semantics<arbitrary>], iteration_bounds = array<i64: 2, 2, 3>, scalar_prefetch = 0 : i64, scratch_operands = 0 : i64, tpu.core_type = #tpu.core_type<tc>, window_params = [{transform_indices = @transform_0, window_bounds = array<i64: 1, 256, 256>}, {transform_indices = @transform_1, window_bounds = array<i64: 256, 256>}, {transform_indices = @transform_2, window_bounds = array<i64: 256, 128>}, {transform_indices = @transform_3, window_bounds = array<i64: 256, 128>}, {transform_indices = @transform_4, window_bounds = array<i64: 1, 256, 256>}]} {
    %c0 = arith.constant 0 : index
    %c0_0 = arith.constant 0 : index
    %c0_1 = arith.constant 0 : index
    %0 = vector.load %arg3[%c0, %c0_0, %c0_1] : memref<1x256x256xbf16, #tpu.memory_space<vmem>>, vector<1x256x256xbf16>
    %1 = vector.shape_cast %0 : vector<1x256x256xbf16> to vector<256x256xbf16>
    %c0_2 = arith.constant 0 : index
    %c0_3 = arith.constant 0 : index
    %2 = vector.load %arg4[%c0_2, %c0_3] : memref<256x256xbf16, #tpu.memory_space<vmem>>, vector<256x256xbf16>
    %cst = arith.constant dense<0.000000e+00> : vector<256x256xf32>
    %3 = tpu.matmul %1, %2, %cst {dimension_numbers = #tpu.dot_dimension_numbers<[1], [0], [0], [1], [0, 0, 1, 1], [], []>} : vector<256x256xbf16>, vector<256x256xbf16>, vector<256x256xf32> -> vector<256x256xf32>
    %c2_i32 = arith.constant 2 : i32
    %4 = arith.cmpi slt, %arg2, %c2_i32 : i32
    %5 = arith.extui %4 : i1 to i32
    %c0_i32 = arith.constant 0 : i32
    %6 = arith.cmpi ne, %5, %c0_i32 : i32
    scf.if %6 {
      %c0_6 = arith.constant 0 : index
      %c0_7 = arith.constant 0 : index
      %10 = vector.load %arg5[%c0_6, %c0_7] : memref<256x128xf32, #tpu.memory_space<vmem>>, vector<256x128xf32>
      %c0_8 = arith.constant 0 : index
      %c0_9 = arith.constant 0 : index
      %11 = vector.load %arg6[%c0_8, %c0_9] : memref<256x128xf32, #tpu.memory_space<vmem>>, vector<256x128xf32>
      %12 = vector.extract_strided_slice %3 {offsets = [0, 0], sizes = [256, 128], strides = [1, 1]} : vector<256x256xf32> to vector<256x128xf32>
      %13 = arith.mulf %12, %10 : vector<256x128xf32>
      %c64_i32 = arith.constant 64 : i32
      %14 = tpu.dynamic_rotate %12 by %c64_i32 dim 1 : vector<256x128xf32>, i32 -> vector<256x128xf32>
      %15 = arith.mulf %14, %11 : vector<256x128xf32>
      %16 = arith.addf %13, %15 : vector<256x128xf32>
      %17 = vector.extract_strided_slice %3 {offsets = [0, 128], sizes = [256, 128], strides = [1, 1]} : vector<256x256xf32> to vector<256x128xf32>
      %18 = arith.mulf %17, %10 : vector<256x128xf32>
      %c64_i32_10 = arith.constant 64 : i32
      %19 = tpu.dynamic_rotate %17 by %c64_i32_10 dim 1 : vector<256x128xf32>, i32 -> vector<256x128xf32>
      %20 = arith.mulf %19, %11 : vector<256x128xf32>
      %21 = arith.addf %18, %20 : vector<256x128xf32>
      %22 = tpu.concatenate %16, %21 in 1 : vector<256x128xf32>, vector<256x128xf32> -> vector<256x256xf32>
      %23 = arith.truncf %22 : vector<256x256xf32> to vector<256x256xbf16>
      %c0_11 = arith.constant 0 : index
      %c0_12 = arith.constant 0 : index
      %c0_13 = arith.constant 0 : index
      %24 = vector.load %arg7[%c0_11, %c0_12, %c0_13] : memref<1x256x256xbf16, #tpu.memory_space<vmem>>, vector<1x256x256xbf16>
      %25 = vector.shape_cast %24 : vector<1x256x256xbf16> to vector<256x256xbf16>
      %26 = vector.shape_cast %23 : vector<256x256xbf16> to vector<1x256x256xbf16>
      tpu.vector_store %arg7[%c0_11, %c0_12, %c0_13], %26 {strides = array<i32>} : memref<1x256x256xbf16, #tpu.memory_space<vmem>>, vector<1x256x256xbf16>,
    } else {
    }
    %c2_i32_4 = arith.constant 2 : i32
    %7 = arith.cmpi sge, %arg2, %c2_i32_4 : i32
    %8 = arith.extui %7 : i1 to i32
    %c0_i32_5 = arith.constant 0 : i32
    %9 = arith.cmpi ne, %8, %c0_i32_5 : i32
    scf.if %9 {
      %10 = arith.truncf %3 : vector<256x256xf32> to vector<256x256xbf16>
      %c0_6 = arith.constant 0 : index
      %c0_7 = arith.constant 0 : index
      %c0_8 = arith.constant 0 : index
      %11 = vector.load %arg7[%c0_6, %c0_7, %c0_8] : memref<1x256x256xbf16, #tpu.memory_space<vmem>>, vector<1x256x256xbf16>
      %12 = vector.shape_cast %11 : vector<1x256x256xbf16> to vector<256x256xbf16>
      %13 = vector.shape_cast %10 : vector<256x256xbf16> to vector<1x256x256xbf16>
      tpu.vector_store %arg7[%c0_6, %c0_7, %c0_8], %13 {strides = array<i32>} : memref<1x256x256xbf16, #tpu.memory_space<vmem>>, vector<1x256x256xbf16>,
    } else {
    }
    return
  }
  func.func @transform_0(%arg0: i32, %arg1: i32, %arg2: i32) -> (i32, i32, i32) {
    %c0_i32 = arith.constant 0 : i32
    %c0_i32_0 = arith.constant 0 : i32
    return %arg0, %arg1, %c0_i32 : i32, i32, i32
  }
  func.func @transform_1(%arg0: i32, %arg1: i32, %arg2: i32) -> (i32, i32) {
    %c0_i32 = arith.constant 0 : i32
    %c0_i32_0 = arith.constant 0 : i32
    return %c0_i32, %arg2 : i32, i32
  }
  func.func @transform_2(%arg0: i32, %arg1: i32, %arg2: i32) -> (i32, i32) {
    %c0_i32 = arith.constant 0 : i32
    %c0_i32_0 = arith.constant 0 : i32
    return %arg1, %c0_i32 : i32, i32
  }
  func.func @transform_3(%arg0: i32, %arg1: i32, %arg2: i32) -> (i32, i32) {
    %c0_i32 = arith.constant 0 : i32
    %c0_i32_0 = arith.constant 0 : i32
    return %arg1, %c0_i32 : i32, i32
  }
  func.func @transform_4(%arg0: i32, %arg1: i32, %arg2: i32) -> (i32, i32, i32) {
    %c0_i32 = arith.constant 0 : i32
    return %arg0, %arg1, %arg2 : i32, i32, i32
  }
}

</mosaic_0001>

<llo_original>
// kernel: tpu_custom_call.1
$region0: #{tpu_custom_call.1}
  #allocation0 [shape = 'u32[]', space=smem, size = 0x4, offset = 0x4, fixed_abs, tag = 'smem constant byte address 0x4 - core index']
  #allocation1 [shape = 'u32[72,128]{1,0:T(1,128)}', space=vmem, size = 0x9000, scoped, tag = 'internal scratch']
  %s0 = inlined_call_operand.hbm [shape: bf16[2,512,256], index: 0, kind: input, shape index: {}]
  %s1 = inlined_call_operand.hbm [shape: bf16[256,768], index: 1, kind: input, shape index: {}]
  %s2 = inlined_call_operand.hbm [shape: f32[512,128], index: 2, kind: input, shape index: {}]
  %s3 = inlined_call_operand.hbm [shape: f32[512,128], index: 3, kind: input, shape index: {}]
  %s4 = inlined_call_operand.hbm [shape: bf16[2,512,768], index: 4, kind: output, shape index: {}]
  %s5 = sld [smem:[#allocation0]]
  $region73: #{tpu_custom_call.1} parent=0
    _
  %s7 = ssub.s32 1, %s5
  %s8 = scalar_select 0, %s7, %s5
  $region1: #{tpu_custom_call.1} parent=0
    #allocation2 [shape = 'u8[262144]{0}', space=vmem, size = 0x40000, scoped, tag = 'input window, operand 0']
    #allocation3 [shape = 's32[2]{0}', space=sflag, size = 0x8, scoped, tag = 'scoped memory for tpu_custom_call.1']
    #allocation4 [shape = 's32[2]{0}', space=sflag, size = 0x8, scoped, tag = 'scoped memory for tpu_custom_call.1']
    #allocation5 [shape = 'u8[262144]{0}', space=vmem, size = 0x40000, scoped, tag = 'input window, operand 1']
    #allocation6 [shape = 's32[2]{0}', space=sflag, size = 0x8, scoped, tag = 'scoped memory for tpu_custom_call.1']
    #allocation7 [shape = 'u8[262144]{0}', space=vmem, size = 0x40000, scoped, tag = 'input window, operand 2']
    #allocation8 [shape = 'u8[262144]{0}', space=vmem, size = 0x40000, scoped, tag = 'input window, operand 3']
    #allocation9 [shape = 's32[2]{0}', space=sflag, size = 0x8, scoped, tag = 'scoped memory for tpu_custom_call.1']
    #allocation10 [shape = 'u8[262144]{0}', space=vmem, size = 0x40000, scoped, tag = 'output window, operand 0']
    %9 = vsyncpa [#allocation3], 0
    %s10 = scalar_lea.sflag [#allocation3], 1
    %11 = vsyncpa %s10, 0
    %12 = vsyncpa [#allocation6], 0
    %s13 = scalar_lea.sflag [#allocation6], 1
    %14 = vsyncpa %s13, 0
    %15 = vsyncpa [#allocation9], 0
    %s16 = scalar_lea.sflag [#allocation9], 1
    %17 = vsyncpa %s16, 0
    %18 = vsyncpa [#allocation4], 0
    %s19 = scalar_lea.sflag [#allocation4], 1
    %20 = vsyncpa %s19, 0
    loop: start=0, step=1, limit=14
    $region2: #{tpu_custom_call.1} parent=1 // loop_pre_header
      _
    $region3: #{tpu_custom_call.1} parent=1 // loop_header
      %s22 = sphi 0, %s26
      %p23 = scmp.ge.s32.totalorder %s22, 14
      %s29 = sphi 0, %s48
      %s30 = sphi 0, %s44
      %s31 = sphi 0, %s40
      %s32 = sphi 0, %s29
      %s33 = sphi 0, %s30
      %s34 = sphi 0, %s31
      %s35 = sphi 0, %s32
      %s36 = sphi 0, %s33
      %s37 = sphi 0, %s34
      %s53 = sphi 0, %s55
      %s56 = sphi 0, %s53
      %s57 = sphi 0, %s56
      %s73 = sphi 0, %s57
      %s79 = sphi 0, %s81
      %s82 = sphi 0, %s79
      %s83 = sphi 0, %s82
      %s99 = sphi 0, %s83
      %s105 = sphi 0, %s107
      %s108 = sphi 0, %s105
      %s109 = sphi 0, %s108
      %s125 = sphi 0, %s109
      %s131 = sphi 0, %s133
      %s134 = sphi 0, %s131
      %s135 = sphi 0, %s134
      %s151 = sphi 0, %s135
      %s161 = sphi 0, %s163
      %s164 = sphi 0, %s161
      %s165 = sphi 0, %s164
      %s181 = sphi 0, %s165
    $region4: #{tpu_custom_call.1} parent=1 // loop_header_branch
      %25 = sbr.rel (%p23) target = $region8
    $region5: #{tpu_custom_call.1} parent=1 // loop_body
      %s27 = ssub.s32 %s22, 1
      %s28 = ssub.s32 %s22, 2
      %s38 = sadd.s32 1, %s31
      %p39 = scmp.ge.s32.totalorder %s38, 3
      %s40 = scalar_select %p39, 0, %s38
      %s41 = sadd.s32 1, %s30
      %s42 = scalar_select %p39, %s41, %s30
      %p43 = scmp.ge.s32.totalorder %s42, 2
      %s44 = scalar_select %p43, 0, %s42
      %s45 = sadd.s32 1, %s29
      %s46 = scalar_select %p43, %s45, %s29
      %p47 = scmp.ge.s32.totalorder %s46, 2
      %s48 = scalar_select %p47, 0, %s46
      %s49 = ssub.s32 %s29, %s48
      %s50 = ssub.s32 %s30, %s44
      %s51 = sor.u32 %s49, %s50
      %p52 = scmp.eq.s32.totalorder %s51, 0
      %s54 = sadd.s32 %s53, 1
      %s55 = scalar_select %p52, %s53, %s54
      %p58 = pneg %p52
      %p59 = scmp.eq.s32.totalorder %s22, 11
      %p60 = por %p58, %p59
      %p61 = scmp.ne.s32.totalorder %s53, %s56
      %p62 = scmp.eq.s32.totalorder %s22, 0
      %p63 = por %p61, %p62
      %p64 = scmp.ne.s32.totalorder %s53, %s56
      %p65 = scmp.eq.s32.totalorder %s27, 11
      %p66 = por %p64, %p65
      %p67 = scmp.ne.s32.totalorder %s56, %s57
      %p68 = scmp.eq.s32.totalorder %s27, 0
      %p69 = por %p67, %p68
      %p70 = scmp.ne.s32.totalorder %s56, %s57
      %p71 = scmp.eq.s32.totalorder %s28, 11
      %p72 = por %p70, %p71
      %p74 = scmp.ne.s32.totalorder %s57, %s73
      %p75 = scmp.eq.s32.totalorder %s28, 0
      %p76 = por %p74, %p75
      %s77 = ssub.s32 %s31, %s40
      %p78 = scmp.eq.s32.totalorder %s77, 0
      %s80 = sadd.s32 %s79, 1
      %s81 = scalar_select %p78, %s79, %s80
      %p84 = pneg %p78
      %p85 = scmp.eq.s32.totalorder %s22, 11
      %p86 = por %p84, %p85
      %p87 = scmp.ne.s32.totalorder %s79, %s82
      %p88 = scmp.eq.s32.totalorder %s22, 0
      %p89 = por %p87, %p88
      %p90 = scmp.ne.s32.totalorder %s79, %s82
      %p91 = scmp.eq.s32.totalorder %s27, 11
      %p92 = por %p90, %p91
      %p93 = scmp.ne.s32.totalorder %s82, %s83
      %p94 = scmp.eq.s32.totalorder %s27, 0
      %p95 = por %p93, %p94
      %p96 = scmp.ne.s32.totalorder %s82, %s83
      %p97 = scmp.eq.s32.totalorder %s28, 11
      %p98 = por %p96, %p97
      %p100 = scmp.ne.s32.totalorder %s83, %s99
      %p101 = scmp.eq.s32.totalorder %s28, 0
      %p102 = por %p100, %p101
      %s103 = ssub.s32 %s30, %s44
      %p104 = scmp.eq.s32.totalorder %s103, 0
      %s106 = sadd.s32 %s105, 1
      %s107 = scalar_select %p104, %s105, %s106
      %p110 = pneg %p104
      %p111 = scmp.eq.s32.totalorder %s22, 11
      %p112 = por %p110, %p111
      %p113 = scmp.ne.s32.totalorder %s105, %s108
      %p114 = scmp.eq.s32.totalorder %s22, 0
      %p115 = por %p113, %p114
      %p116 = scmp.ne.s32.totalorder %s105, %s108
      %p117 = scmp.eq.s32.totalorder %s27, 11
      %p118 = por %p116, %p117
      %p119 = scmp.ne.s32.totalorder %s108, %s109
      %p120 = scmp.eq.s32.totalorder %s27, 0
      %p121 = por %p119, %p120
      %p122 = scmp.ne.s32.totalorder %s108, %s109
      %p123 = scmp.eq.s32.totalorder %s28, 11
      %p124 = por %p122, %p123
      %p126 = scmp.ne.s32.totalorder %s109, %s125
      %p127 = scmp.eq.s32.totalorder %s28, 0
      %p128 = por %p126, %p127
      %s129 = ssub.s32 %s30, %s44
      %p130 = scmp.eq.s32.totalorder %s129, 0
      %s132 = sadd.s32 %s131, 1
      %s133 = scalar_select %p130, %s131, %s132
      %p136 = pneg %p130
      %p137 = scmp.eq.s32.totalorder %s22, 11
      %p138 = por %p136, %p137
      %p139 = scmp.ne.s32.totalorder %s131, %s134
      %p140 = scmp.eq.s32.totalorder %s22, 0
      %p141 = por %p139, %p140
      %p142 = scmp.ne.s32.totalorder %s131, %s134
      %p143 = scmp.eq.s32.totalorder %s27, 11
      %p144 = por %p142, %p143
      %p145 = scmp.ne.s32.totalorder %s134, %s135
      %p146 = scmp.eq.s32.totalorder %s27, 0
      %p147 = por %p145, %p146
      %p148 = scmp.ne.s32.totalorder %s134, %s135
      %p149 = scmp.eq.s32.totalorder %s28, 11
      %p150 = por %p148, %p149
      %p152 = scmp.ne.s32.totalorder %s135, %s151
      %p153 = scmp.eq.s32.totalorder %s28, 0
      %p154 = por %p152, %p153
      %s155 = ssub.s32 %s29, %s48
      %s156 = ssub.s32 %s30, %s44
      %s157 = sor.u32 %s155, %s156
      %s158 = ssub.s32 %s31, %s40
      %s159 = sor.u32 %s157, %s158
      %p160 = scmp.eq.s32.totalorder %s159, 0
      %s162 = sadd.s32 %s161, 1
      %s163 = scalar_select %p160, %s161, %s162
      %p166 = pneg %p160
      %p167 = scmp.eq.s32.totalorder %s22, 11
      %p168 = por %p166, %p167
      %p169 = scmp.ne.s32.totalorder %s161, %s164
      %p170 = scmp.eq.s32.totalorder %s22, 0
      %p171 = por %p169, %p170
      %p172 = scmp.ne.s32.totalorder %s161, %s164
      %p173 = scmp.eq.s32.totalorder %s27, 11
      %p174 = por %p172, %p173
      %p175 = scmp.ne.s32.totalorder %s164, %s165
      %p176 = scmp.eq.s32.totalorder %s27, 0
      %p177 = por %p175, %p176
      %p178 = scmp.ne.s32.totalorder %s164, %s165
      %p179 = scmp.eq.s32.totalorder %s28, 11
      %p180 = por %p178, %p179
      %p182 = scmp.ne.s32.totalorder %s165, %s181
      %p183 = scmp.eq.s32.totalorder %s28, 0
      %p184 = por %p182, %p183
      %p185 = scmp.le.s32.totalorder 1, %s22
      %p186 = scmp.lt.s32.totalorder %s22, 13
      %p187 = pnand %p185, %p186
      %p188 = pneg %p187
      // Predicated region
      $region9: #{tpu_custom_call.1} parent=5 // pred_check
        _
      $region10: #{tpu_custom_call.1} parent=5 // pred_check_branch
        %190 = sbr.rel (%p187) target = $region12
      $region11: #{tpu_custom_call.1} parent=5 // pred_region
        %s191 = ssub.s32 %s22, 1
      $region12: #{tpu_custom_call.1} parent=5 // pred_fallthru
        _
      %p192 = scmp.lt.s32.totalorder %s22, 12
      // Predicated region
      $region13: #{tpu_custom_call.1} parent=5 // pred_check
        %p193 = pneg %p192
      $region14: #{tpu_custom_call.1} parent=5 // pred_check_branch
        %195 = sbr.rel (%p193) target = $region16
      $region15: #{tpu_custom_call.1} parent=5 // pred_region
        // Predicated region
        $region17: #{tpu_custom_call.1} parent=15 // pred_check
          %p196 = pneg %p63
        $region18: #{tpu_custom_call.1} parent=15 // pred_check_branch
          %198 = sbr.rel (%p196) target = $region20
        $region19: #{tpu_custom_call.1} parent=15 // pred_region
          %s199 = sand.u32 %s53, 1
          %s200 = scalar_lea.sflag [#allocation3], %s199
          %s201 = sand.u32 %s53, 1
          %s202 = smul.addr %s201, 256
          %s203 = scalar_lea.vmem [#allocation2], %s202
          %s204 = smul.u32 32, %s30
          %206 = vsyncadd %s200, 0
          %s207 = smul.addr %s204, 2
          %s208 = smul.addr %s29, 128
          %s209 = sadd.s32 %s207, %s208
          %s210 = smul.addr %s209, 4
          %s211 = scalar_lea.hbm %s0, %s210
          %s212 = sshll.u32 %s211, 4
          %s213 = int_to_ptr.hbm [resolvable:$true] %s212
          %s214 = sshll.u32 %s203, 4
          %s215 = int_to_ptr.vmem [resolvable:$true] %s214
          %220 = dma.hbm_to_vmem [thread:$0]  %s213, 4096, %s215, %s200, 128, 128, 8
        $region20: #{tpu_custom_call.1} parent=15 // pred_fallthru
          _
        // Predicated region
        $region21: #{tpu_custom_call.1} parent=15 // pred_check
          %p221 = pneg %p89
        $region22: #{tpu_custom_call.1} parent=15 // pred_check_branch
          %223 = sbr.rel (%p221) target = $region24
        $region23: #{tpu_custom_call.1} parent=15 // pred_region
          %s224 = sand.u32 %s22, 1
          %s225 = scalar_lea.sflag [#allocation6], %s224
          %s226 = sand.u32 %s79, 1
          %s227 = smul.addr %s226, 256
          %s228 = scalar_lea.vmem [#allocation5], %s227
          %s229 = smul.u32 2, %s31
          %231 = vsyncadd %s225, 0
          %s232 = smul.addr %s229, 4
          %s233 = scalar_lea.hbm %s1, %s232
          %s234 = sshll.u32 %s233, 4
          %s235 = int_to_ptr.hbm [resolvable:$true] %s234
          %s236 = sshll.u32 %s228, 4
          %s237 = int_to_ptr.vmem [resolvable:$true] %s236
          %242 = dma.hbm_to_vmem [thread:$0]  %s235, 4096, %s237, %s225, 384, 128, 8
        $region24: #{tpu_custom_call.1} parent=15 // pred_fallthru
          _
        // Predicated region
        $region25: #{tpu_custom_call.1} parent=15 // pred_check
          %p243 = pneg %p115
        $region26: #{tpu_custom_call.1} parent=15 // pred_check_branch
          %245 = sbr.rel (%p243) target = $region28
        $region27: #{tpu_custom_call.1} parent=15 // pred_region
          %s246 = sand.u32 %s22, 1
          %s247 = scalar_lea.sflag [#allocation6], %s246
          %s248 = sand.u32 %s105, 1
          %s249 = smul.addr %s248, 256
          %s250 = scalar_lea.vmem [#allocation7], %s249
          %s251 = smul.u32 32, %s30
          %253 = vsyncadd %s247, 0
          %s254 = smul.addr %s251, 8
          %s255 = scalar_lea.hbm %s2, %s254
          %s256 = sshll.u32 %s255, 4
          %s257 = int_to_ptr.hbm [resolvable:$true] %s256
          %s258 = sshll.u32 %s250, 4
          %s259 = int_to_ptr.vmem [resolvable:$true] %s258
          %264 = dma.hbm_to_vmem [thread:$0]  %s257, 4096, %s259, %s247, 128, 128, 8
        $region28: #{tpu_custom_call.1} parent=15 // pred_fallthru
          _
        // Predicated region
        $region29: #{tpu_custom_call.1} parent=15 // pred_check
          %p265 = pneg %p141
        $region30: #{tpu_custom_call.1} parent=15 // pred_check_branch
          %267 = sbr.rel (%p265) target = $region32
        $region31: #{tpu_custom_call.1} parent=15 // pred_region
          %s268 = sand.u32 %s131, 1
          %s269 = scalar_lea.sflag [#allocation9], %s268
          %s270 = sand.u32 %s131, 1
          %s271 = smul.addr %s270, 256
          %s272 = scalar_lea.vmem [#allocation8], %s271
          %s273 = smul.u32 32, %s30
          %275 = vsyncadd %s269, 0
          %s276 = smul.addr %s273, 8
          %s277 = scalar_lea.hbm %s3, %s276
          %s278 = sshll.u32 %s277, 4
          %s279 = int_to_ptr.hbm [resolvable:$true] %s278
          %s280 = sshll.u32 %s272, 4
          %s281 = int_to_ptr.vmem [resolvable:$true] %s280
          %286 = dma.hbm_to_vmem [thread:$0]  %s279, 4096, %s281, %s269, 128, 128, 8
        $region32: #{tpu_custom_call.1} parent=15 // pred_fallthru
          _
      $region16: #{tpu_custom_call.1} parent=5 // pred_fallthru
        _
      %p287 = scmp.le.s32.totalorder 1, %s22
      %p288 = scmp.lt.s32.totalorder %s22, 13
      %p289 = pnand %p287, %p288
      %p290 = pneg %p289
      // Predicated region
      $region33: #{tpu_custom_call.1} parent=5 // pred_check
        _
      $region34: #{tpu_custom_call.1} parent=5 // pred_check_branch
        %292 = sbr.rel (%p289) target = $region36
      $region35: #{tpu_custom_call.1} parent=5 // pred_region
        %s293 = ssub.s32 %s22, 1
        %s294 = sand.u32 %s56, 1
        %s295 = scalar_lea.sflag [#allocation3], %s294
        %s296 = sand.u32 %s56, 1
        %s297 = smul.addr %s296, 256
        %s298 = scalar_lea.vmem [#allocation2], %s297
        // Predicated region
        $region37: #{tpu_custom_call.1} parent=35 // pred_check
          %p299 = pneg %p69
        $region38: #{tpu_custom_call.1} parent=35 // pred_check_branch
          %301 = sbr.rel (%p299) target = $region40
        $region39: #{tpu_custom_call.1} parent=35 // pred_region
          %303 = dma.done %s295, 4096
        $region40: #{tpu_custom_call.1} parent=35 // pred_fallthru
          _
        %s304 = sand.u32 %s27, 1
        %s305 = scalar_lea.sflag [#allocation6], %s304
        %s306 = sand.u32 %s82, 1
        %s307 = smul.addr %s306, 256
        %s308 = scalar_lea.vmem [#allocation5], %s307
        // Predicated region
        $region41: #{tpu_custom_call.1} parent=35 // pred_check
          %p309 = pneg %p95
        $region42: #{tpu_custom_call.1} parent=35 // pred_check_branch
          %311 = sbr.rel (%p309) target = $region44
        $region43: #{tpu_custom_call.1} parent=35 // pred_region
          %313 = dma.done %s305, 4096
        $region44: #{tpu_custom_call.1} parent=35 // pred_fallthru
          _
        %s314 = sand.u32 %s27, 1
        %s315 = scalar_lea.sflag [#allocation6], %s314
        %s316 = sand.u32 %s108, 1
        %s317 = smul.addr %s316, 256
        %s318 = scalar_lea.vmem [#allocation7], %s317
        // Predicated region
        $region45: #{tpu_custom_call.1} parent=35 // pred_check
          %p319 = pneg %p121
        $region46: #{tpu_custom_call.1} parent=35 // pred_check_branch
          %321 = sbr.rel (%p319) target = $region48
        $region47: #{tpu_custom_call.1} parent=35 // pred_region
          %323 = dma.done %s315, 4096
        $region48: #{tpu_custom_call.1} parent=35 // pred_fallthru
          _
        %s324 = sand.u32 %s134, 1
        %s325 = scalar_lea.sflag [#allocation9], %s324
        %s326 = sand.u32 %s134, 1
        %s327 = smul.addr %s326, 256
        %s328 = scalar_lea.vmem [#allocation8], %s327
        // Predicated region
        $region49: #{tpu_custom_call.1} parent=35 // pred_check
          %p329 = pneg %p147
        $region50: #{tpu_custom_call.1} parent=35 // pred_check_branch
          %331 = sbr.rel (%p329) target = $region52
        $region51: #{tpu_custom_call.1} parent=35 // pred_region
          %333 = dma.done %s325, 4096
        $region52: #{tpu_custom_call.1} parent=35 // pred_fallthru
          _
        %s334 = sand.u32 %s56, 1
        %s335 = scalar_lea.sflag [#allocation3], %s334
        %s336 = sand.u32 %s56, 1
        %s337 = smul.addr %s336, 256
        %s338 = scalar_lea.vmem [#allocation2], %s337
        %p339 = pneg %p69
        %p340 = pneg %p66
        %s341 = sand.u32 %s27, 1
        %s342 = scalar_lea.sflag [#allocation6], %s341
        %s343 = sand.u32 %s82, 1
        %s344 = smul.addr %s343, 256
        %s345 = scalar_lea.vmem [#allocation5], %s344
        %p346 = pneg %p95
        %p347 = pneg %p92
        %s348 = sand.u32 %s27, 1
        %s349 = scalar_lea.sflag [#allocation6], %s348
        %s350 = sand.u32 %s108, 1
        %s351 = smul.addr %s350, 256
        %s352 = scalar_lea.vmem [#allocation7], %s351
        %p353 = pneg %p121
        %p354 = pneg %p118
        %s355 = sand.u32 %s134, 1
        %s356 = scalar_lea.sflag [#allocation9], %s355
        %s357 = sand.u32 %s134, 1
        %s358 = smul.addr %s357, 256
        %s359 = scalar_lea.vmem [#allocation8], %s358
        %p360 = pneg %p147
        %p361 = pneg %p144
        %p362 = pneg %p177
        %p363 = pneg %p174
        %s364 = sand.u32 %s164, 1
        %s365 = scalar_lea.sflag [#allocation4], %s364
        %s366 = sand.u32 %s164, 1
        %s367 = smul.addr %s366, 256
        %s368 = scalar_lea.vmem [#allocation10], %s367
        %s369 = smul.u32 32, %s33
        %s370 = smul.u32 2, %s34
        %s371 = smul.u32 32, %s33
        %s372 = smul.u32 32, %s33
        %s373 = smul.u32 32, %s33
        %s374 = smul.u32 2, %s34
        %v375 = vld [vmem:[%s298] sm:$0xff]
        %v376 = vld [vmem:[%s298 + $0x8] sm:$0xff]
        %v377 = vld [vmem:[%s298 + $0x10] sm:$0xff]
        %v378 = vld [vmem:[%s298 + $0x18] sm:$0xff]
        %v379 = vld [vmem:[%s298 + $0x20] sm:$0xff]
        %v380 = vld [vmem:[%s298 + $0x28] sm:$0xff]
        %v381 = vld [vmem:[%s298 + $0x30] sm:$0xff]
        %v382 = vld [vmem:[%s298 + $0x38] sm:$0xff]
        %v383 = vld [vmem:[%s298 + $0x40] sm:$0xff]
        %v384 = vld [vmem:[%s298 + $0x48] sm:$0xff]
        %v385 = vld [vmem:[%s298 + $0x50] sm:$0xff]
        %v386 = vld [vmem:[%s298 + $0x58] sm:$0xff]
        %v387 = vld [vmem:[%s298 + $0x60] sm:$0xff]
        %v388 = vld [vmem:[%s298 + $0x68] sm:$0xff]
        %v389 = vld [vmem:[%s298 + $0x70] sm:$0xff]
        %v390 = vld [vmem:[%s298 + $0x78] sm:$0xff]
        %v391 = vld [vmem:[%s298 + $0x80] sm:$0xff]
        %v392 = vld [vmem:[%s298 + $0x88] sm:$0xff]
        %v393 = vld [vmem:[%s298 + $0x90] sm:$0xff]
        %v394 = vld [vmem:[%s298 + $0x98] sm:$0xff]
        %v395 = vld [vmem:[%s298 + $0xa0] sm:$0xff]
        %v396 = vld [vmem:[%s298 + $0xa8] sm:$0xff]
        %v397 = vld [vmem:[%s298 + $0xb0] sm:$0xff]
        %v398 = vld [vmem:[%s298 + $0xb8] sm:$0xff]
        %v399 = vld [vmem:[%s298 + $0xc0] sm:$0xff]
        %v400 = vld [vmem:[%s298 + $0xc8] sm:$0xff]
        %v401 = vld [vmem:[%s298 + $0xd0] sm:$0xff]
        %v402 = vld [vmem:[%s298 + $0xd8] sm:$0xff]
        %v403 = vld [vmem:[%s298 + $0xe0] sm:$0xff]
        %v404 = vld [vmem:[%s298 + $0xe8] sm:$0xff]
        %v405 = vld [vmem:[%s298 + $0xf0] sm:$0xff]
        %v406 = vld [vmem:[%s298 + $0xf8] sm:$0xff]
        %v407 = vld [vmem:[%s308] sm:$0xff]
        %v408 = vld [vmem:[%s308 + $0x8] sm:$0xff]
        %v409 = vld [vmem:[%s308 + $0x10] sm:$0xff]
        %v410 = vld [vmem:[%s308 + $0x18] sm:$0xff]
        %v411 = vld [vmem:[%s308 + $0x20] sm:$0xff]
        %v412 = vld [vmem:[%s308 + $0x28] sm:$0xff]
        %v413 = vld [vmem:[%s308 + $0x30] sm:$0xff]
        %v414 = vld [vmem:[%s308 + $0x38] sm:$0xff]
        %v415 = vld [vmem:[%s308 + $0x40] sm:$0xff]
        %v416 = vld [vmem:[%s308 + $0x48] sm:$0xff]
        %v417 = vld [vmem:[%s308 + $0x50] sm:$0xff]
        %v418 = vld [vmem:[%s308 + $0x58] sm:$0xff]
        %v419 = vld [vmem:[%s308 + $0x60] sm:$0xff]
        %v420 = vld [vmem:[%s308 + $0x68] sm:$0xff]
        %v421 = vld [vmem:[%s308 + $0x70] sm:$0xff]
        %v422 = vld [vmem:[%s308 + $0x78] sm:$0xff]
        %v423 = vld [vmem:[%s308 + $0x80] sm:$0xff]
        %v424 = vld [vmem:[%s308 + $0x88] sm:$0xff]
        %v425 = vld [vmem:[%s308 + $0x90] sm:$0xff]
        %v426 = vld [vmem:[%s308 + $0x98] sm:$0xff]
        %v427 = vld [vmem:[%s308 + $0xa0] sm:$0xff]
        %v428 = vld [vmem:[%s308 + $0xa8] sm:$0xff]
        %v429 = vld [vmem:[%s308 + $0xb0] sm:$0xff]
        %v430 = vld [vmem:[%s308 + $0xb8] sm:$0xff]
        %v431 = vld [vmem:[%s308 + $0xc0] sm:$0xff]
        %v432 = vld [vmem:[%s308 + $0xc8] sm:$0xff]
        %v433 = vld [vmem:[%s308 + $0xd0] sm:$0xff]
        %v434 = vld [vmem:[%s308 + $0xd8] sm:$0xff]
        %v435 = vld [vmem:[%s308 + $0xe0] sm:$0xff]
        %v436 = vld [vmem:[%s308 + $0xe8] sm:$0xff]
        %v437 = vld [vmem:[%s308 + $0xf0] sm:$0xff]
        %v438 = vld [vmem:[%s308 + $0xf8] sm:$0xff]
        %v471 = vunpack.c.l.b16 %v375
        %v472 = vunpack.c.h.b16 %v375
        %v473 = vunpack.c.l.b16 %v376
        %v474 = vunpack.c.h.b16 %v376
        %v475 = vunpack.c.l.b16 %v377
        %v476 = vunpack.c.h.b16 %v377
        %v477 = vunpack.c.l.b16 %v378
        %v478 = vunpack.c.h.b16 %v378
        %v479 = vunpack.c.l.b16 %v379
        %v480 = vunpack.c.h.b16 %v379
        %v481 = vunpack.c.l.b16 %v380
        %v482 = vunpack.c.h.b16 %v380
        %v483 = vunpack.c.l.b16 %v381
        %v484 = vunpack.c.h.b16 %v381
        %v485 = vunpack.c.l.b16 %v382
        %v486 = vunpack.c.h.b16 %v382
        %v487 = vunpack.c.l.b16 %v383
        %v488 = vunpack.c.h.b16 %v383
        %v489 = vunpack.c.l.b16 %v384
        %v490 = vunpack.c.h.b16 %v384
        %v491 = vunpack.c.l.b16 %v385
        %v492 = vunpack.c.h.b16 %v385
        %v493 = vunpack.c.l.b16 %v386
        %v494 = vunpack.c.h.b16 %v386
        %v495 = vunpack.c.l.b16 %v387
        %v496 = vunpack.c.h.b16 %v387
        %v497 = vunpack.c.l.b16 %v388
        %v498 = vunpack.c.h.b16 %v388
        %v499 = vunpack.c.l.b16 %v389
        %v500 = vunpack.c.h.b16 %v389
        %v501 = vunpack.c.l.b16 %v390
        %v502 = vunpack.c.h.b16 %v390
        %v503 = vunpack.c.l.b16 %v391
        %v504 = vunpack.c.h.b16 %v391
        %v505 = vunpack.c.l.b16 %v392
        %v506 = vunpack.c.h.b16 %v392
        %v507 = vunpack.c.l.b16 %v393
        %v508 = vunpack.c.h.b16 %v393
        %v509 = vunpack.c.l.b16 %v394
        %v510 = vunpack.c.h.b16 %v394
        %v511 = vunpack.c.l.b16 %v395
        %v512 = vunpack.c.h.b16 %v395
        %v513 = vunpack.c.l.b16 %v396
        %v514 = vunpack.c.h.b16 %v396
        %v515 = vunpack.c.l.b16 %v397
        %v516 = vunpack.c.h.b16 %v397
        %v517 = vunpack.c.l.b16 %v398
        %v518 = vunpack.c.h.b16 %v398
        %v519 = vunpack.c.l.b16 %v399
        %v520 = vunpack.c.h.b16 %v399
        %v521 = vunpack.c.l.b16 %v400
        %v522 = vunpack.c.h.b16 %v400
        %v523 = vunpack.c.l.b16 %v401
        %v524 = vunpack.c.h.b16 %v401
        %v525 = vunpack.c.l.b16 %v402
        %v526 = vunpack.c.h.b16 %v402
        %v527 = vunpack.c.l.b16 %v403
        %v528 = vunpack.c.h.b16 %v403
        %v529 = vunpack.c.l.b16 %v404
        %v530 = vunpack.c.h.b16 %v404
        %v531 = vunpack.c.l.b16 %v405
        %v532 = vunpack.c.h.b16 %v405
        %v533 = vunpack.c.l.b16 %v406
        %v534 = vunpack.c.h.b16 %v406
        %v535 = vpack.c.b16 %v473, %v471
        %v536 = vpack.c.b16 %v474, %v472
        %v537 = vpack.c.b16 %v477, %v475
        %v538 = vpack.c.b16 %v478, %v476
        %v539 = vpack.c.b16 %v481, %v479
        %v540 = vpack.c.b16 %v482, %v480
        %v541 = vpack.c.b16 %v485, %v483
        %v542 = vpack.c.b16 %v486, %v484
        %v543 = vpack.c.b16 %v489, %v487
        %v544 = vpack.c.b16 %v490, %v488
        %v545 = vpack.c.b16 %v493, %v491
        %v546 = vpack.c.b16 %v494, %v492
        %v547 = vpack.c.b16 %v497, %v495
        %v548 = vpack.c.b16 %v498, %v496
        %v549 = vpack.c.b16 %v501, %v499
        %v550 = vpack.c.b16 %v502, %v500
        %v551 = vpack.c.b16 %v505, %v503
        %v552 = vpack.c.b16 %v506, %v504
        %v553 = vpack.c.b16 %v509, %v507
        %v554 = vpack.c.b16 %v510, %v508
        %v555 = vpack.c.b16 %v513, %v511
        %v556 = vpack.c.b16 %v514, %v512
        %v557 = vpack.c.b16 %v517, %v515
        %v558 = vpack.c.b16 %v518, %v516
        %v559 = vpack.c.b16 %v521, %v519
        %v560 = vpack.c.b16 %v522, %v520
        %v561 = vpack.c.b16 %v525, %v523
        %v562 = vpack.c.b16 %v526, %v524
        %v563 = vpack.c.b16 %v529, %v527
        %v564 = vpack.c.b16 %v530, %v528
        %v565 = vpack.c.b16 %v533, %v531
        %v566 = vpack.c.b16 %v534, %v532
        %v631 = vunpack.c.l.b16 %v407
        %v632 = vunpack.c.h.b16 %v407
        %v633 = vunpack.c.l.b16 %v408
        %v634 = vunpack.c.h.b16 %v408
        %v635 = vunpack.c.l.b16 %v409
        %v636 = vunpack.c.h.b16 %v409
        %v637 = vunpack.c.l.b16 %v410
        %v638 = vunpack.c.h.b16 %v410
        %v639 = vunpack.c.l.b16 %v411
        %v640 = vunpack.c.h.b16 %v411
        %v641 = vunpack.c.l.b16 %v412
        %v642 = vunpack.c.h.b16 %v412
        %v643 = vunpack.c.l.b16 %v413
        %v644 = vunpack.c.h.b16 %v413
        %v645 = vunpack.c.l.b16 %v414
        %v646 = vunpack.c.h.b16 %v414
        %v647 = vunpack.c.l.b16 %v415
        %v648 = vunpack.c.h.b16 %v415
        %v649 = vunpack.c.l.b16 %v416
        %v650 = vunpack.c.h.b16 %v416
        %v651 = vunpack.c.l.b16 %v417
        %v652 = vunpack.c.h.b16 %v417
        %v653 = vunpack.c.l.b16 %v418
        %v654 = vunpack.c.h.b16 %v418
        %v655 = vunpack.c.l.b16 %v419
        %v656 = vunpack.c.h.b16 %v419
        %v657 = vunpack.c.l.b16 %v420
        %v658 = vunpack.c.h.b16 %v420
        %v659 = vunpack.c.l.b16 %v421
        %v660 = vunpack.c.h.b16 %v421
        %v661 = vunpack.c.l.b16 %v422
        %v662 = vunpack.c.h.b16 %v422
        %v663 = vunpack.c.l.b16 %v423
        %v664 = vunpack.c.h.b16 %v423
        %v665 = vunpack.c.l.b16 %v424
        %v666 = vunpack.c.h.b16 %v424
        %v667 = vunpack.c.l.b16 %v425
        %v668 = vunpack.c.h.b16 %v425
        %v669 = vunpack.c.l.b16 %v426
        %v670 = vunpack.c.h.b16 %v426
        %v671 = vunpack.c.l.b16 %v427
        %v672 = vunpack.c.h.b16 %v427
        %v673 = vunpack.c.l.b16 %v428
        %v674 = vunpack.c.h.b16 %v428
        %v675 = vunpack.c.l.b16 %v429
        %v676 = vunpack.c.h.b16 %v429
        %v677 = vunpack.c.l.b16 %v430
        %v678 = vunpack.c.h.b16 %v430
        %v679 = vunpack.c.l.b16 %v431
        %v680 = vunpack.c.h.b16 %v431
        %v681 = vunpack.c.l.b16 %v432
        %v682 = vunpack.c.h.b16 %v432
        %v683 = vunpack.c.l.b16 %v433
        %v684 = vunpack.c.h.b16 %v433
        %v685 = vunpack.c.l.b16 %v434
        %v686 = vunpack.c.h.b16 %v434
        %v687 = vunpack.c.l.b16 %v435
        %v688 = vunpack.c.h.b16 %v435
        %v689 = vunpack.c.l.b16 %v436
        %v690 = vunpack.c.h.b16 %v436
        %v691 = vunpack.c.l.b16 %v437
        %v692 = vunpack.c.h.b16 %v437
        %v693 = vunpack.c.l.b16 %v438
        %v694 = vunpack.c.h.b16 %v438
        %v695 = vpack.c.b16 %v633, %v631
        %v696 = vpack.c.b16 %v634, %v632
        %v697 = vpack.c.b16 %v637, %v635
        %v698 = vpack.c.b16 %v638, %v636
        %v699 = vpack.c.b16 %v641, %v639
        %v700 = vpack.c.b16 %v642, %v640
        %v701 = vpack.c.b16 %v645, %v643
        %v702 = vpack.c.b16 %v646, %v644
        %v703 = vpack.c.b16 %v649, %v647
        %v704 = vpack.c.b16 %v650, %v648
        %v705 = vpack.c.b16 %v653, %v651
        %v706 = vpack.c.b16 %v654, %v652
        %v707 = vpack.c.b16 %v657, %v655
        %v708 = vpack.c.b16 %v658, %v656
        %v709 = vpack.c.b16 %v661, %v659
        %v710 = vpack.c.b16 %v662, %v660
        %v711 = vpack.c.b16 %v665, %v663
        %v712 = vpack.c.b16 %v666, %v664
        %v713 = vpack.c.b16 %v669, %v667
        %v714 = vpack.c.b16 %v670, %v668
        %v715 = vpack.c.b16 %v673, %v671
        %v716 = vpack.c.b16 %v674, %v672
        %v717 = vpack.c.b16 %v677, %v675
        %v718 = vpack.c.b16 %v678, %v676
        %v719 = vpack.c.b16 %v681, %v679
        %v720 = vpack.c.b16 %v682, %v680
        %v721 = vpack.c.b16 %v685, %v683
        %v722 = vpack.c.b16 %v686, %v684
        %v723 = vpack.c.b16 %v689, %v687
        %v724 = vpack.c.b16 %v690, %v688
        %v725 = vpack.c.b16 %v693, %v691
        %v726 = vpack.c.b16 %v694, %v692
        %759 = vmatpush.bf16.msra.mxu0 %v709
        %760 = vmatpush.bf16.msra.mxu0 %v707
        %761 = vmatpush.bf16.msra.mxu0 %v705
        %762 = vmatpush.bf16.msra.mxu0 %v703
        %763 = vmatpush.bf16.msra.mxu0 %v701
        %764 = vmatpush.bf16.msra.mxu0 %v699
        %765 = vmatpush.bf16.msra.mxu0 %v697
        %766 = vmatpush.bf16.msra.mxu0 %v695
        %767 = vmatmul.bf16.gmra.mxu0 %v535
        %v768 = vpop.f32.mrf.mxu0
        %v769 = vadd.f32 0.0, %v768
        %v770 = vpop.f32.mrf.mxu0
        %v771 = vadd.f32 0.0, %v770
        %772 = vmatmul.bf16.gmra.mxu0 %v537
        %v773 = vpop.f32.mrf.mxu0
        %v774 = vadd.f32 0.0, %v773
        %v775 = vpop.f32.mrf.mxu0
        %v776 = vadd.f32 0.0, %v775
        %777 = vmatmul.bf16.gmra.mxu0 %v539
        %v778 = vpop.f32.mrf.mxu0
        %v779 = vadd.f32 0.0, %v778
        %v780 = vpop.f32.mrf.mxu0
        %v781 = vadd.f32 0.0, %v780
        %782 = vmatmul.bf16.gmra.mxu0 %v541
        %v783 = vpop.f32.mrf.mxu0
        %v784 = vadd.f32 0.0, %v783
        %v785 = vpop.f32.mrf.mxu0
        %v786 = vadd.f32 0.0, %v785
        %787 = vmatmul.bf16.gmra.mxu0 %v543
        %v788 = vpop.f32.mrf.mxu0
        %v789 = vadd.f32 0.0, %v788
        %v790 = vpop.f32.mrf.mxu0
        %v791 = vadd.f32 0.0, %v790
        %792 = vmatmul.bf16.gmra.mxu0 %v545
        %v793 = vpop.f32.mrf.mxu0
        %v794 = vadd.f32 0.0, %v793
        %v795 = vpop.f32.mrf.mxu0
        %v796 = vadd.f32 0.0, %v795
        %797 = vmatmul.bf16.gmra.mxu0 %v547
        %v798 = vpop.f32.mrf.mxu0
        %v799 = vadd.f32 0.0, %v798
        %v800 = vpop.f32.mrf.mxu0
        %v801 = vadd.f32 0.0, %v800
        %802 = vmatmul.bf16.gmra.mxu0 %v549
        %v803 = vpop.f32.mrf.mxu0
        %v804 = vadd.f32 0.0, %v803
        %v805 = vpop.f32.mrf.mxu0
        %v806 = vadd.f32 0.0, %v805
        %807 = vmatmul.bf16.gmra.mxu0 %v551
        %v808 = vpop.f32.mrf.mxu0
        %v809 = vadd.f32 0.0, %v808
        %v810 = vpop.f32.mrf.mxu0
        %v811 = vadd.f32 0.0, %v810
        %812 = vmatmul.bf16.gmra.mxu0 %v553
        %v813 = vpop.f32.mrf.mxu0
        %v814 = vadd.f32 0.0, %v813
        %v815 = vpop.f32.mrf.mxu0
        %v816 = vadd.f32 0.0, %v815
        %817 = vmatmul.bf16.gmra.mxu0 %v555
        %v818 = vpop.f32.mrf.mxu0
        %v819 = vadd.f32 0.0, %v818
        %v820 = vpop.f32.mrf.mxu0
        %v821 = vadd.f32 0.0, %v820
        %822 = vmatmul.bf16.gmra.mxu0 %v557
        %v823 = vpop.f32.mrf.mxu0
        %v824 = vadd.f32 0.0, %v823
        %v825 = vpop.f32.mrf.mxu0
        %v826 = vadd.f32 0.0, %v825
        %827 = vmatmul.bf16.gmra.mxu0 %v559
        %v828 = vpop.f32.mrf.mxu0
        %v829 = vadd.f32 0.0, %v828
        %v830 = vpop.f32.mrf.mxu0
        %v831 = vadd.f32 0.0, %v830
        %832 = vmatmul.bf16.gmra.mxu0 %v561
        %v833 = vpop.f32.mrf.mxu0
        %v834 = vadd.f32 0.0, %v833
        %v835 = vpop.f32.mrf.mxu0
        %v836 = vadd.f32 0.0, %v835
        %837 = vmatmul.bf16.gmra.mxu0 %v563
        %v838 = vpop.f32.mrf.mxu0
        %v839 = vadd.f32 0.0, %v838
        %v840 = vpop.f32.mrf.mxu0
        %v841 = vadd.f32 0.0, %v840
        %842 = vmatmul.bf16.gmra.mxu0 %v565
        %v843 = vpop.f32.mrf.mxu0
        %v844 = vadd.f32 0.0, %v843
        %v845 = vpop.f32.mrf.mxu0
        %v846 = vadd.f32 0.0, %v845
        %847 = vdwg.mxu0
        %848 = vmatpush.bf16.msra.mxu0 %v725
        %849 = vmatpush.bf16.msra.mxu0 %v723
        %850 = vmatpush.bf16.msra.mxu0 %v721
        %851 = vmatpush.bf16.msra.mxu0 %v719
        %852 = vmatpush.bf16.msra.mxu0 %v717
        %853 = vmatpush.bf16.msra.mxu0 %v715
        %854 = vmatpush.bf16.msra.mxu0 %v713
        %855 = vmatpush.bf16.msra.mxu0 %v711
        %856 = vmatmul.bf16.gmra.mxu0 %v536
        %v857 = vpop.f32.mrf.mxu0
        %v858 = vadd.f32 %v769, %v857
        %v859 = vpop.f32.mrf.mxu0
        %v860 = vadd.f32 %v771, %v859
        %861 = vmatmul.bf16.gmra.mxu0 %v538
        %v862 = vpop.f32.mrf.mxu0
        %v863 = vadd.f32 %v774, %v862
        %v864 = vpop.f32.mrf.mxu0
        %v865 = vadd.f32 %v776, %v864
        %866 = vmatmul.bf16.gmra.mxu0 %v540
        %v867 = vpop.f32.mrf.mxu0
        %v868 = vadd.f32 %v779, %v867
        %v869 = vpop.f32.mrf.mxu0
        %v870 = vadd.f32 %v781, %v869
        %871 = vmatmul.bf16.gmra.mxu0 %v542
        %v872 = vpop.f32.mrf.mxu0
        %v873 = vadd.f32 %v784, %v872
        %v874 = vpop.f32.mrf.mxu0
        %v875 = vadd.f32 %v786, %v874
        %876 = vmatmul.bf16.gmra.mxu0 %v544
        %v877 = vpop.f32.mrf.mxu0
        %v878 = vadd.f32 %v789, %v877
        %v879 = vpop.f32.mrf.mxu0
        %v880 = vadd.f32 %v791, %v879
        %881 = vmatmul.bf16.gmra.mxu0 %v546
        %v882 = vpop.f32.mrf.mxu0
        %v883 = vadd.f32 %v794, %v882
        %v884 = vpop.f32.mrf.mxu0
        %v885 = vadd.f32 %v796, %v884
        %886 = vmatmul.bf16.gmra.mxu0 %v548
        %v887 = vpop.f32.mrf.mxu0
        %v888 = vadd.f32 %v799, %v887
        %v889 = vpop.f32.mrf.mxu0
        %v890 = vadd.f32 %v801, %v889
        %891 = vmatmul.bf16.gmra.mxu0 %v550
        %v892 = vpop.f32.mrf.mxu0
        %v893 = vadd.f32 %v804, %v892
        %v894 = vpop.f32.mrf.mxu0
        %v895 = vadd.f32 %v806, %v894
        %896 = vmatmul.bf16.gmra.mxu0 %v552
        %v897 = vpop.f32.mrf.mxu0
        %v898 = vadd.f32 %v809, %v897
        %v899 = vpop.f32.mrf.mxu0
        %v900 = vadd.f32 %v811, %v899
        %901 = vmatmul.bf16.gmra.mxu0 %v554
        %v902 = vpop.f32.mrf.mxu0
        %v903 = vadd.f32 %v814, %v902
        %v904 = vpop.f32.mrf.mxu0
        %v905 = vadd.f32 %v816, %v904
        %906 = vmatmul.bf16.gmra.mxu0 %v556
        %v907 = vpop.f32.mrf.mxu0
        %v908 = vadd.f32 %v819, %v907
        %v909 = vpop.f32.mrf.mxu0
        %v910 = vadd.f32 %v821, %v909
        %911 = vmatmul.bf16.gmra.mxu0 %v558
        %v912 = vpop.f32.mrf.mxu0
        %v913 = vadd.f32 %v824, %v912
        %v914 = vpop.f32.mrf.mxu0
        %v915 = vadd.f32 %v826, %v914
        %916 = vmatmul.bf16.gmra.mxu0 %v560
        %v917 = vpop.f32.mrf.mxu0
        %v918 = vadd.f32 %v829, %v917
        %v919 = vpop.f32.mrf.mxu0
        %v920 = vadd.f32 %v831, %v919
        %921 = vmatmul.bf16.gmra.mxu0 %v562
        %v922 = vpop.f32.mrf.mxu0
        %v923 = vadd.f32 %v834, %v922
        %v924 = vpop.f32.mrf.mxu0
        %v925 = vadd.f32 %v836, %v924
        %926 = vmatmul.bf16.gmra.mxu0 %v564
        %v927 = vpop.f32.mrf.mxu0
        %v928 = vadd.f32 %v839, %v927
        %v929 = vpop.f32.mrf.mxu0
        %v930 = vadd.f32 %v841, %v929
        %931 = vmatmul.bf16.gmra.mxu0 %v566
        %v932 = vpop.f32.mrf.mxu0
        %v933 = vadd.f32 %v844, %v932
        %v934 = vpop.f32.mrf.mxu0
        %v935 = vadd.f32 %v846, %v934
        %936 = vdwg.mxu0
        %937 = vmatpush.bf16.msra.mxu0 %v710
        %938 = vmatpush.bf16.msra.mxu0 %v708
        %939 = vmatpush.bf16.msra.mxu0 %v706
        %940 = vmatpush.bf16.msra.mxu0 %v704
        %941 = vmatpush.bf16.msra.mxu0 %v702
        %942 = vmatpush.bf16.msra.mxu0 %v700
        %943 = vmatpush.bf16.msra.mxu0 %v698
        %944 = vmatpush.bf16.msra.mxu0 %v696
        %945 = vmatmul.bf16.gmra.mxu0 %v535
        %v946 = vpop.f32.mrf.mxu0
        %v947 = vadd.f32 0.0, %v946
        %v948 = vpop.f32.mrf.mxu0
        %v949 = vadd.f32 0.0, %v948
        %950 = vmatmul.bf16.gmra.mxu0 %v537
        %v951 = vpop.f32.mrf.mxu0
        %v952 = vadd.f32 0.0, %v951
        %v953 = vpop.f32.mrf.mxu0
        %v954 = vadd.f32 0.0, %v953
        %955 = vmatmul.bf16.gmra.mxu0 %v539
        %v956 = vpop.f32.mrf.mxu0
        %v957 = vadd.f32 0.0, %v956
        %v958 = vpop.f32.mrf.mxu0
        %v959 = vadd.f32 0.0, %v958
        %960 = vmatmul.bf16.gmra.mxu0 %v541
        %v961 = vpop.f32.mrf.mxu0
        %v962 = vadd.f32 0.0, %v961
        %v963 = vpop.f32.mrf.mxu0
        %v964 = vadd.f32 0.0, %v963
        %965 = vmatmul.bf16.gmra.mxu0 %v543
        %v966 = vpop.f32.mrf.mxu0
        %v967 = vadd.f32 0.0, %v966
        %v968 = vpop.f32.mrf.mxu0
        %v969 = vadd.f32 0.0, %v968
        %970 = vmatmul.bf16.gmra.mxu0 %v545
        %v971 = vpop.f32.mrf.mxu0
        %v972 = vadd.f32 0.0, %v971
        %v973 = vpop.f32.mrf.mxu0
        %v974 = vadd.f32 0.0, %v973
        %975 = vmatmul.bf16.gmra.mxu0 %v547
        %v976 = vpop.f32.mrf.mxu0
        %v977 = vadd.f32 0.0, %v976
        %v978 = vpop.f32.mrf.mxu0
        %v979 = vadd.f32 0.0, %v978
        %980 = vmatmul.bf16.gmra.mxu0 %v549
        %v981 = vpop.f32.mrf.mxu0
        %v982 = vadd.f32 0.0, %v981
        %v983 = vpop.f32.mrf.mxu0
        %v984 = vadd.f32 0.0, %v983
        %985 = vmatmul.bf16.gmra.mxu0 %v551
        %v986 = vpop.f32.mrf.mxu0
        %v987 = vadd.f32 0.0, %v986
        %v988 = vpop.f32.mrf.mxu0
        %v989 = vadd.f32 0.0, %v988
        %990 = vmatmul.bf16.gmra.mxu0 %v553
        %v991 = vpop.f32.mrf.mxu0
        %v992 = vadd.f32 0.0, %v991
        %v993 = vpop.f32.mrf.mxu0
        %v994 = vadd.f32 0.0, %v993
        %995 = vmatmul.bf16.gmra.mxu0 %v555
        %v996 = vpop.f32.mrf.mxu0
        %v997 = vadd.f32 0.0, %v996
        %v998 = vpop.f32.mrf.mxu0
        %v999 = vadd.f32 0.0, %v998
        %1000 = vmatmul.bf16.gmra.mxu0 %v557
        %v1001 = vpop.f32.mrf.mxu0
        %v1002 = vadd.f32 0.0, %v1001
        %v1003 = vpop.f32.mrf.mxu0
        %v1004 = vadd.f32 0.0, %v1003
        %1005 = vmatmul.bf16.gmra.mxu0 %v559
        %v1006 = vpop.f32.mrf.mxu0
        %v1007 = vadd.f32 0.0, %v1006
        %v1008 = vpop.f32.mrf.mxu0
        %v1009 = vadd.f32 0.0, %v1008
        %1010 = vmatmul.bf16.gmra.mxu0 %v561
        %v1011 = vpop.f32.mrf.mxu0
        %v1012 = vadd.f32 0.0, %v1011
        %v1013 = vpop.f32.mrf.mxu0
        %v1014 = vadd.f32 0.0, %v1013
        %1015 = vmatmul.bf16.gmra.mxu0 %v563
        %v1016 = vpop.f32.mrf.mxu0
        %v1017 = vadd.f32 0.0, %v1016
        %v1018 = vpop.f32.mrf.mxu0
        %v1019 = vadd.f32 0.0, %v1018
        %1020 = vmatmul.bf16.gmra.mxu0 %v565
        %v1021 = vpop.f32.mrf.mxu0
        %v1022 = vadd.f32 0.0, %v1021
        %v1023 = vpop.f32.mrf.mxu0
        %v1024 = vadd.f32 0.0, %v1023
        %1025 = vdwg.mxu0
        %1026 = vmatpush.bf16.msra.mxu0 %v726
        %1027 = vmatpush.bf16.msra.mxu0 %v724
        %1028 = vmatpush.bf16.msra.mxu0 %v722
        %1029 = vmatpush.bf16.msra.mxu0 %v720
        %1030 = vmatpush.bf16.msra.mxu0 %v718
        %1031 = vmatpush.bf16.msra.mxu0 %v716
        %1032 = vmatpush.bf16.msra.mxu0 %v714
        %1033 = vmatpush.bf16.msra.mxu0 %v712
        %1034 = vmatmul.bf16.gmra.mxu0 %v536
        %v1035 = vpop.f32.mrf.mxu0
        %v1036 = vadd.f32 %v947, %v1035
        %v1037 = vpop.f32.mrf.mxu0
        %v1038 = vadd.f32 %v949, %v1037
        %1039 = vmatmul.bf16.gmra.mxu0 %v538
        %v1040 = vpop.f32.mrf.mxu0
        %v1041 = vadd.f32 %v952, %v1040
        %v1042 = vpop.f32.mrf.mxu0
        %v1043 = vadd.f32 %v954, %v1042
        %1044 = vmatmul.bf16.gmra.mxu0 %v540
        %v1045 = vpop.f32.mrf.mxu0
        %v1046 = vadd.f32 %v957, %v1045
        %v1047 = vpop.f32.mrf.mxu0
        %v1048 = vadd.f32 %v959, %v1047
        %1049 = vmatmul.bf16.gmra.mxu0 %v542
        %v1050 = vpop.f32.mrf.mxu0
        %v1051 = vadd.f32 %v962, %v1050
        %v1052 = vpop.f32.mrf.mxu0
        %v1053 = vadd.f32 %v964, %v1052
        %1054 = vmatmul.bf16.gmra.mxu0 %v544
        %v1055 = vpop.f32.mrf.mxu0
        %v1056 = vadd.f32 %v967, %v1055
        %v1057 = vpop.f32.mrf.mxu0
        %v1058 = vadd.f32 %v969, %v1057
        %1059 = vmatmul.bf16.gmra.mxu0 %v546
        %v1060 = vpop.f32.mrf.mxu0
        %v1061 = vadd.f32 %v972, %v1060
        %v1062 = vpop.f32.mrf.mxu0
        %v1063 = vadd.f32 %v974, %v1062
        %1064 = vmatmul.bf16.gmra.mxu0 %v548
        %v1065 = vpop.f32.mrf.mxu0
        %v1066 = vadd.f32 %v977, %v1065
        %v1067 = vpop.f32.mrf.mxu0
        %v1068 = vadd.f32 %v979, %v1067
        %1069 = vmatmul.bf16.gmra.mxu0 %v550
        %v1070 = vpop.f32.mrf.mxu0
        %v1071 = vadd.f32 %v982, %v1070
        %v1072 = vpop.f32.mrf.mxu0
        %v1073 = vadd.f32 %v984, %v1072
        %1074 = vmatmul.bf16.gmra.mxu0 %v552
        %v1075 = vpop.f32.mrf.mxu0
        %v1076 = vadd.f32 %v987, %v1075
        %v1077 = vpop.f32.mrf.mxu0
        %v1078 = vadd.f32 %v989, %v1077
        %1079 = vmatmul.bf16.gmra.mxu0 %v554
        %v1080 = vpop.f32.mrf.mxu0
        %v1081 = vadd.f32 %v992, %v1080
        %v1082 = vpop.f32.mrf.mxu0
        %v1083 = vadd.f32 %v994, %v1082
        %1084 = vmatmul.bf16.gmra.mxu0 %v556
        %v1085 = vpop.f32.mrf.mxu0
        %v1086 = vadd.f32 %v997, %v1085
        %v1087 = vpop.f32.mrf.mxu0
        %v1088 = vadd.f32 %v999, %v1087
        %1089 = vmatmul.bf16.gmra.mxu0 %v558
        %v1090 = vpop.f32.mrf.mxu0
        %v1091 = vadd.f32 %v1002, %v1090
        %v1092 = vpop.f32.mrf.mxu0
        %v1093 = vadd.f32 %v1004, %v1092
        %1094 = vmatmul.bf16.gmra.mxu0 %v560
        %v1095 = vpop.f32.mrf.mxu0
        %v1096 = vadd.f32 %v1007, %v1095
        %v1097 = vpop.f32.mrf.mxu0
        %v1098 = vadd.f32 %v1009, %v1097
        %1099 = vmatmul.bf16.gmra.mxu0 %v562
        %v1100 = vpop.f32.mrf.mxu0
        %v1101 = vadd.f32 %v1012, %v1100
        %v1102 = vpop.f32.mrf.mxu0
        %v1103 = vadd.f32 %v1014, %v1102
        %1104 = vmatmul.bf16.gmra.mxu0 %v564
        %v1105 = vpop.f32.mrf.mxu0
        %v1106 = vadd.f32 %v1017, %v1105
        %v1107 = vpop.f32.mrf.mxu0
        %v1108 = vadd.f32 %v1019, %v1107
        %1109 = vmatmul.bf16.gmra.mxu0 %v566
        %v1110 = vpop.f32.mrf.mxu0
        %v1111 = vadd.f32 %v1022, %v1110
        %v1112 = vpop.f32.mrf.mxu0
        %v1113 = vadd.f32 %v1024, %v1112
        %1114 = vdwg.mxu0
        %p1115 = scmp.lt.s32.totalorder %s34, 2
        // Predicated region
        $region53: #{tpu_custom_call.1} parent=35 // pred_check
          %p1116 = pneg %p1115
        $region54: #{tpu_custom_call.1} parent=35 // pred_check_branch
          %1118 = sbr.rel (%p1116) target = $region56
        $region55: #{tpu_custom_call.1} parent=35 // pred_region
          %v1119 = vld [vmem:[%s318] sm:$0xff]
          %v1120 = vld [vmem:[%s318 + $0x8] sm:$0xff]
          %v1121 = vld [vmem:[%s318 + $0x10] sm:$0xff]
          %v1122 = vld [vmem:[%s318 + $0x18] sm:$0xff]
          %v1123 = vld [vmem:[%s318 + $0x20] sm:$0xff]
          %v1124 = vld [vmem:[%s318 + $0x28] sm:$0xff]
          %v1125 = vld [vmem:[%s318 + $0x30] sm:$0xff]
          %v1126 = vld [vmem:[%s318 + $0x38] sm:$0xff]
          %v1127 = vld [vmem:[%s318 + $0x40] sm:$0xff]
          %v1128 = vld [vmem:[%s318 + $0x48] sm:$0xff]
          %v1129 = vld [vmem:[%s318 + $0x50] sm:$0xff]
          %v1130 = vld [vmem:[%s318 + $0x58] sm:$0xff]
          %v1131 = vld [vmem:[%s318 + $0x60] sm:$0xff]
          %v1132 = vld [vmem:[%s318 + $0x68] sm:$0xff]
          %v1133 = vld [vmem:[%s318 + $0x70] sm:$0xff]
          %v1134 = vld [vmem:[%s318 + $0x78] sm:$0xff]
          %v1135 = vld [vmem:[%s318 + $0x80] sm:$0xff]
          %v1136 = vld [vmem:[%s318 + $0x88] sm:$0xff]
          %v1137 = vld [vmem:[%s318 + $0x90] sm:$0xff]
          %v1138 = vld [vmem:[%s318 + $0x98] sm:$0xff]
          %v1139 = vld [vmem:[%s318 + $0xa0] sm:$0xff]
          %v1140 = vld [vmem:[%s318 + $0xa8] sm:$0xff]
          %v1141 = vld [vmem:[%s318 + $0xb0] sm:$0xff]
          %v1142 = vld [vmem:[%s318 + $0xb8] sm:$0xff]
          %v1143 = vld [vmem:[%s318 + $0xc0] sm:$0xff]
          %v1144 = vld [vmem:[%s318 + $0xc8] sm:$0xff]
          %v1145 = vld [vmem:[%s318 + $0xd0] sm:$0xff]
          %v1146 = vld [vmem:[%s318 + $0xd8] sm:$0xff]
          %v1147 = vld [vmem:[%s318 + $0xe0] sm:$0xff]
          %v1148 = vld [vmem:[%s318 + $0xe8] sm:$0xff]
          %v1149 = vld [vmem:[%s318 + $0xf0] sm:$0xff]
          %v1150 = vld [vmem:[%s318 + $0xf8] sm:$0xff]
          %v1151 = vld [vmem:[%s328] sm:$0xff]
          %v1152 = vld [vmem:[%s328 + $0x8] sm:$0xff]
          %v1153 = vld [vmem:[%s328 + $0x10] sm:$0xff]
          %v1154 = vld [vmem:[%s328 + $0x18] sm:$0xff]
          %v1155 = vld [vmem:[%s328 + $0x20] sm:$0xff]
          %v1156 = vld [vmem:[%s328 + $0x28] sm:$0xff]
          %v1157 = vld [vmem:[%s328 + $0x30] sm:$0xff]
          %v1158 = vld [vmem:[%s328 + $0x38] sm:$0xff]
          %v1159 = vld [vmem:[%s328 + $0x40] sm:$0xff]
          %v1160 = vld [vmem:[%s328 + $0x48] sm:$0xff]
          %v1161 = vld [vmem:[%s328 + $0x50] sm:$0xff]
          %v1162 = vld [vmem:[%s328 + $0x58] sm:$0xff]
          %v1163 = vld [vmem:[%s328 + $0x60] sm:$0xff]
          %v1164 = vld [vmem:[%s328 + $0x68] sm:$0xff]
          %v1165 = vld [vmem:[%s328 + $0x70] sm:$0xff]
          %v1166 = vld [vmem:[%s328 + $0x78] sm:$0xff]
          %v1167 = vld [vmem:[%s328 + $0x80] sm:$0xff]
          %v1168 = vld [vmem:[%s328 + $0x88] sm:$0xff]
          %v1169 = vld [vmem:[%s328 + $0x90] sm:$0xff]
          %v1170 = vld [vmem:[%s328 + $0x98] sm:$0xff]
          %v1171 = vld [vmem:[%s328 + $0xa0] sm:$0xff]
          %v1172 = vld [vmem:[%s328 + $0xa8] sm:$0xff]
          %v1173 = vld [vmem:[%s328 + $0xb0] sm:$0xff]
          %v1174 = vld [vmem:[%s328 + $0xb8] sm:$0xff]
          %v1175 = vld [vmem:[%s328 + $0xc0] sm:$0xff]
          %v1176 = vld [vmem:[%s328 + $0xc8] sm:$0xff]
          %v1177 = vld [vmem:[%s328 + $0xd0] sm:$0xff]
          %v1178 = vld [vmem:[%s328 + $0xd8] sm:$0xff]
          %v1179 = vld [vmem:[%s328 + $0xe0] sm:$0xff]
          %v1180 = vld [vmem:[%s328 + $0xe8] sm:$0xff]
          %v1181 = vld [vmem:[%s328 + $0xf0] sm:$0xff]
          %v1182 = vld [vmem:[%s328 + $0xf8] sm:$0xff]
          %v1183 = vmul.f32 %v858, %v1119
          %v1184 = vmul.f32 %v860, %v1120
          %v1185 = vmul.f32 %v863, %v1121
          %v1186 = vmul.f32 %v865, %v1122
          %v1187 = vmul.f32 %v868, %v1123
          %v1188 = vmul.f32 %v870, %v1124
          %v1189 = vmul.f32 %v873, %v1125
          %v1190 = vmul.f32 %v875, %v1126
          %v1191 = vmul.f32 %v878, %v1127
          %v1192 = vmul.f32 %v880, %v1128
          %v1193 = vmul.f32 %v883, %v1129
          %v1194 = vmul.f32 %v885, %v1130
          %v1195 = vmul.f32 %v888, %v1131
          %v1196 = vmul.f32 %v890, %v1132
          %v1197 = vmul.f32 %v893, %v1133
          %v1198 = vmul.f32 %v895, %v1134
          %v1199 = vmul.f32 %v898, %v1135
          %v1200 = vmul.f32 %v900, %v1136
          %v1201 = vmul.f32 %v903, %v1137
          %v1202 = vmul.f32 %v905, %v1138
          %v1203 = vmul.f32 %v908, %v1139
          %v1204 = vmul.f32 %v910, %v1140
          %v1205 = vmul.f32 %v913, %v1141
          %v1206 = vmul.f32 %v915, %v1142
          %v1207 = vmul.f32 %v918, %v1143
          %v1208 = vmul.f32 %v920, %v1144
          %v1209 = vmul.f32 %v923, %v1145
          %v1210 = vmul.f32 %v925, %v1146
          %v1211 = vmul.f32 %v928, %v1147
          %v1212 = vmul.f32 %v930, %v1148
          %v1213 = vmul.f32 %v933, %v1149
          %v1214 = vmul.f32 %v935, %v1150
          %1215 = vrot.lane.b32.xlu0 %v858, 64
          %v1216 = vpop.permute.xlu0 %1215
          %1217 = vrot.lane.b32.xlu0 %v860, 64
          %v1218 = vpop.permute.xlu0 %1217
          %1219 = vrot.lane.b32.xlu0 %v863, 64
          %v1220 = vpop.permute.xlu0 %1219
          %1221 = vrot.lane.b32.xlu0 %v865, 64
          %v1222 = vpop.permute.xlu0 %1221
          %1223 = vrot.lane.b32.xlu0 %v868, 64
          %v1224 = vpop.permute.xlu0 %1223
          %1225 = vrot.lane.b32.xlu0 %v870, 64
          %v1226 = vpop.permute.xlu0 %1225
          %1227 = vrot.lane.b32.xlu0 %v873, 64
          %v1228 = vpop.permute.xlu0 %1227
          %1229 = vrot.lane.b32.xlu0 %v875, 64
          %v1230 = vpop.permute.xlu0 %1229
          %1231 = vrot.lane.b32.xlu0 %v878, 64
          %v1232 = vpop.permute.xlu0 %1231
          %1233 = vrot.lane.b32.xlu0 %v880, 64
          %v1234 = vpop.permute.xlu0 %1233
          %1235 = vrot.lane.b32.xlu0 %v883, 64
          %v1236 = vpop.permute.xlu0 %1235
          %1237 = vrot.lane.b32.xlu0 %v885, 64
          %v1238 = vpop.permute.xlu0 %1237
          %1239 = vrot.lane.b32.xlu0 %v888, 64
          %v1240 = vpop.permute.xlu0 %1239
          %1241 = vrot.lane.b32.xlu0 %v890, 64
          %v1242 = vpop.permute.xlu0 %1241
          %1243 = vrot.lane.b32.xlu0 %v893, 64
          %v1244 = vpop.permute.xlu0 %1243
          %1245 = vrot.lane.b32.xlu0 %v895, 64
          %v1246 = vpop.permute.xlu0 %1245
          %1247 = vrot.lane.b32.xlu0 %v898, 64
          %v1248 = vpop.permute.xlu0 %1247
          %1249 = vrot.lane.b32.xlu0 %v900, 64
          %v1250 = vpop.permute.xlu0 %1249
          %1251 = vrot.lane.b32.xlu0 %v903, 64
          %v1252 = vpop.permute.xlu0 %1251
          %1253 = vrot.lane.b32.xlu0 %v905, 64
          %v1254 = vpop.permute.xlu0 %1253
          %1255 = vrot.lane.b32.xlu0 %v908, 64
          %v1256 = vpop.permute.xlu0 %1255
          %1257 = vrot.lane.b32.xlu0 %v910, 64
          %v1258 = vpop.permute.xlu0 %1257
          %1259 = vrot.lane.b32.xlu0 %v913, 64
          %v1260 = vpop.permute.xlu0 %1259
          %1261 = vrot.lane.b32.xlu0 %v915, 64
          %v1262 = vpop.permute.xlu0 %1261
          %1263 = vrot.lane.b32.xlu0 %v918, 64
          %v1264 = vpop.permute.xlu0 %1263
          %1265 = vrot.lane.b32.xlu0 %v920, 64
          %v1266 = vpop.permute.xlu0 %1265
          %1267 = vrot.lane.b32.xlu0 %v923, 64
          %v1268 = vpop.permute.xlu0 %1267
          %1269 = vrot.lane.b32.xlu0 %v925, 64
          %v1270 = vpop.permute.xlu0 %1269
          %1271 = vrot.lane.b32.xlu0 %v928, 64
          %v1272 = vpop.permute.xlu0 %1271
          %1273 = vrot.lane.b32.xlu0 %v930, 64
          %v1274 = vpop.permute.xlu0 %1273
          %1275 = vrot.lane.b32.xlu0 %v933, 64
          %v1276 = vpop.permute.xlu0 %1275
          %1277 = vrot.lane.b32.xlu0 %v935, 64
          %v1278 = vpop.permute.xlu0 %1277
          %v1279 = vmul.f32 %v1216, %v1151
          %v1280 = vmul.f32 %v1218, %v1152
          %v1281 = vmul.f32 %v1220, %v1153
          %v1282 = vmul.f32 %v1222, %v1154
          %v1283 = vmul.f32 %v1224, %v1155
          %v1284 = vmul.f32 %v1226, %v1156
          %v1285 = vmul.f32 %v1228, %v1157
          %v1286 = vmul.f32 %v1230, %v1158
          %v1287 = vmul.f32 %v1232, %v1159
          %v1288 = vmul.f32 %v1234, %v1160
          %v1289 = vmul.f32 %v1236, %v1161
          %v1290 = vmul.f32 %v1238, %v1162
          %v1291 = vmul.f32 %v1240, %v1163
          %v1292 = vmul.f32 %v1242, %v1164
          %v1293 = vmul.f32 %v1244, %v1165
          %v1294 = vmul.f32 %v1246, %v1166
          %v1295 = vmul.f32 %v1248, %v1167
          %v1296 = vmul.f32 %v1250, %v1168
          %v1297 = vmul.f32 %v1252, %v1169
          %v1298 = vmul.f32 %v1254, %v1170
          %v1299 = vmul.f32 %v1256, %v1171
          %v1300 = vmul.f32 %v1258, %v1172
          %v1301 = vmul.f32 %v1260, %v1173
          %v1302 = vmul.f32 %v1262, %v1174
          %v1303 = vmul.f32 %v1264, %v1175
          %v1304 = vmul.f32 %v1266, %v1176
          %v1305 = vmul.f32 %v1268, %v1177
          %v1306 = vmul.f32 %v1270, %v1178
          %v1307 = vmul.f32 %v1272, %v1179
          %v1308 = vmul.f32 %v1274, %v1180
          %v1309 = vmul.f32 %v1276, %v1181
          %v1310 = vmul.f32 %v1278, %v1182
          %v1311 = vadd.f32 %v1183, %v1279
          %v1312 = vadd.f32 %v1184, %v1280
          %v1313 = vadd.f32 %v1185, %v1281
          %v1314 = vadd.f32 %v1186, %v1282
          %v1315 = vadd.f32 %v1187, %v1283
          %v1316 = vadd.f32 %v1188, %v1284
          %v1317 = vadd.f32 %v1189, %v1285
          %v1318 = vadd.f32 %v1190, %v1286
          %v1319 = vadd.f32 %v1191, %v1287
          %v1320 = vadd.f32 %v1192, %v1288
          %v1321 = vadd.f32 %v1193, %v1289
          %v1322 = vadd.f32 %v1194, %v1290
          %v1323 = vadd.f32 %v1195, %v1291
          %v1324 = vadd.f32 %v1196, %v1292
          %v1325 = vadd.f32 %v1197, %v1293
          %v1326 = vadd.f32 %v1198, %v1294
          %v1327 = vadd.f32 %v1199, %v1295
          %v1328 = vadd.f32 %v1200, %v1296
          %v1329 = vadd.f32 %v1201, %v1297
          %v1330 = vadd.f32 %v1202, %v1298
          %v1331 = vadd.f32 %v1203, %v1299
          %v1332 = vadd.f32 %v1204, %v1300
          %v1333 = vadd.f32 %v1205, %v1301
          %v1334 = vadd.f32 %v1206, %v1302
          %v1335 = vadd.f32 %v1207, %v1303
          %v1336 = vadd.f32 %v1208, %v1304
          %v1337 = vadd.f32 %v1209, %v1305
          %v1338 = vadd.f32 %v1210, %v1306
          %v1339 = vadd.f32 %v1211, %v1307
          %v1340 = vadd.f32 %v1212, %v1308
          %v1341 = vadd.f32 %v1213, %v1309
          %v1342 = vadd.f32 %v1214, %v1310
          %v1343 = vmul.f32 %v1036, %v1119
          %v1344 = vmul.f32 %v1038, %v1120
          %v1345 = vmul.f32 %v1041, %v1121
          %v1346 = vmul.f32 %v1043, %v1122
          %v1347 = vmul.f32 %v1046, %v1123
          %v1348 = vmul.f32 %v1048, %v1124
          %v1349 = vmul.f32 %v1051, %v1125
          %v1350 = vmul.f32 %v1053, %v1126
          %v1351 = vmul.f32 %v1056, %v1127
          %v1352 = vmul.f32 %v1058, %v1128
          %v1353 = vmul.f32 %v1061, %v1129
          %v1354 = vmul.f32 %v1063, %v1130
          %v1355 = vmul.f32 %v1066, %v1131
          %v1356 = vmul.f32 %v1068, %v1132
          %v1357 = vmul.f32 %v1071, %v1133
          %v1358 = vmul.f32 %v1073, %v1134
          %v1359 = vmul.f32 %v1076, %v1135
          %v1360 = vmul.f32 %v1078, %v1136
          %v1361 = vmul.f32 %v1081, %v1137
          %v1362 = vmul.f32 %v1083, %v1138
          %v1363 = vmul.f32 %v1086, %v1139
          %v1364 = vmul.f32 %v1088, %v1140
          %v1365 = vmul.f32 %v1091, %v1141
          %v1366 = vmul.f32 %v1093, %v1142
          %v1367 = vmul.f32 %v1096, %v1143
          %v1368 = vmul.f32 %v1098, %v1144
          %v1369 = vmul.f32 %v1101, %v1145
          %v1370 = vmul.f32 %v1103, %v1146
          %v1371 = vmul.f32 %v1106, %v1147
          %v1372 = vmul.f32 %v1108, %v1148
          %v1373 = vmul.f32 %v1111, %v1149
          %v1374 = vmul.f32 %v1113, %v1150
          %1375 = vrot.lane.b32.xlu0 %v1036, 64
          %v1376 = vpop.permute.xlu0 %1375
          %1377 = vrot.lane.b32.xlu0 %v1038, 64
          %v1378 = vpop.permute.xlu0 %1377
          %1379 = vrot.lane.b32.xlu0 %v1041, 64
          %v1380 = vpop.permute.xlu0 %1379
          %1381 = vrot.lane.b32.xlu0 %v1043, 64
          %v1382 = vpop.permute.xlu0 %1381
          %1383 = vrot.lane.b32.xlu0 %v1046, 64
          %v1384 = vpop.permute.xlu0 %1383
          %1385 = vrot.lane.b32.xlu0 %v1048, 64
          %v1386 = vpop.permute.xlu0 %1385
          %1387 = vrot.lane.b32.xlu0 %v1051, 64
          %v1388 = vpop.permute.xlu0 %1387
          %1389 = vrot.lane.b32.xlu0 %v1053, 64
          %v1390 = vpop.permute.xlu0 %1389
          %1391 = vrot.lane.b32.xlu0 %v1056, 64
          %v1392 = vpop.permute.xlu0 %1391
          %1393 = vrot.lane.b32.xlu0 %v1058, 64
          %v1394 = vpop.permute.xlu0 %1393
          %1395 = vrot.lane.b32.xlu0 %v1061, 64
          %v1396 = vpop.permute.xlu0 %1395
          %1397 = vrot.lane.b32.xlu0 %v1063, 64
          %v1398 = vpop.permute.xlu0 %1397
          %1399 = vrot.lane.b32.xlu0 %v1066, 64
          %v1400 = vpop.permute.xlu0 %1399
          %1401 = vrot.lane.b32.xlu0 %v1068, 64
          %v1402 = vpop.permute.xlu0 %1401
          %1403 = vrot.lane.b32.xlu0 %v1071, 64
          %v1404 = vpop.permute.xlu0 %1403
          %1405 = vrot.lane.b32.xlu0 %v1073, 64
          %v1406 = vpop.permute.xlu0 %1405
          %1407 = vrot.lane.b32.xlu0 %v1076, 64
          %v1408 = vpop.permute.xlu0 %1407
          %1409 = vrot.lane.b32.xlu0 %v1078, 64
          %v1410 = vpop.permute.xlu0 %1409
          %1411 = vrot.lane.b32.xlu0 %v1081, 64
          %v1412 = vpop.permute.xlu0 %1411
          %1413 = vrot.lane.b32.xlu0 %v1083, 64
          %v1414 = vpop.permute.xlu0 %1413
          %1415 = vrot.lane.b32.xlu0 %v1086, 64
          %v1416 = vpop.permute.xlu0 %1415
          %1417 = vrot.lane.b32.xlu0 %v1088, 64
          %v1418 = vpop.permute.xlu0 %1417
          %1419 = vrot.lane.b32.xlu0 %v1091, 64
          %v1420 = vpop.permute.xlu0 %1419
          %1421 = vrot.lane.b32.xlu0 %v1093, 64
          %v1422 = vpop.permute.xlu0 %1421
          %1423 = vrot.lane.b32.xlu0 %v1096, 64
          %v1424 = vpop.permute.xlu0 %1423
          %1425 = vrot.lane.b32.xlu0 %v1098, 64
          %v1426 = vpop.permute.xlu0 %1425
          %1427 = vrot.lane.b32.xlu0 %v1101, 64
          %v1428 = vpop.permute.xlu0 %1427
          %1429 = vrot.lane.b32.xlu0 %v1103, 64
          %v1430 = vpop.permute.xlu0 %1429
          %1431 = vrot.lane.b32.xlu0 %v1106, 64
          %v1432 = vpop.permute.xlu0 %1431
          %1433 = vrot.lane.b32.xlu0 %v1108, 64
          %v1434 = vpop.permute.xlu0 %1433
          %1435 = vrot.lane.b32.xlu0 %v1111, 64
          %v1436 = vpop.permute.xlu0 %1435
          %1437 = vrot.lane.b32.xlu0 %v1113, 64
          %v1438 = vpop.permute.xlu0 %1437
          %v1439 = vmul.f32 %v1376, %v1151
          %v1440 = vmul.f32 %v1378, %v1152
          %v1441 = vmul.f32 %v1380, %v1153
          %v1442 = vmul.f32 %v1382, %v1154
          %v1443 = vmul.f32 %v1384, %v1155
          %v1444 = vmul.f32 %v1386, %v1156
          %v1445 = vmul.f32 %v1388, %v1157
          %v1446 = vmul.f32 %v1390, %v1158
          %v1447 = vmul.f32 %v1392, %v1159
          %v1448 = vmul.f32 %v1394, %v1160
          %v1449 = vmul.f32 %v1396, %v1161
          %v1450 = vmul.f32 %v1398, %v1162
          %v1451 = vmul.f32 %v1400, %v1163
          %v1452 = vmul.f32 %v1402, %v1164
          %v1453 = vmul.f32 %v1404, %v1165
          %v1454 = vmul.f32 %v1406, %v1166
          %v1455 = vmul.f32 %v1408, %v1167
          %v1456 = vmul.f32 %v1410, %v1168
          %v1457 = vmul.f32 %v1412, %v1169
          %v1458 = vmul.f32 %v1414, %v1170
          %v1459 = vmul.f32 %v1416, %v1171
          %v1460 = vmul.f32 %v1418, %v1172
          %v1461 = vmul.f32 %v1420, %v1173
          %v1462 = vmul.f32 %v1422, %v1174
          %v1463 = vmul.f32 %v1424, %v1175
          %v1464 = vmul.f32 %v1426, %v1176
          %v1465 = vmul.f32 %v1428, %v1177
          %v1466 = vmul.f32 %v1430, %v1178
          %v1467 = vmul.f32 %v1432, %v1179
          %v1468 = vmul.f32 %v1434, %v1180
          %v1469 = vmul.f32 %v1436, %v1181
          %v1470 = vmul.f32 %v1438, %v1182
          %v1471 = vadd.f32 %v1343, %v1439
          %v1472 = vadd.f32 %v1344, %v1440
          %v1473 = vadd.f32 %v1345, %v1441
          %v1474 = vadd.f32 %v1346, %v1442
          %v1475 = vadd.f32 %v1347, %v1443
          %v1476 = vadd.f32 %v1348, %v1444
          %v1477 = vadd.f32 %v1349, %v1445
          %v1478 = vadd.f32 %v1350, %v1446
          %v1479 = vadd.f32 %v1351, %v1447
          %v1480 = vadd.f32 %v1352, %v1448
          %v1481 = vadd.f32 %v1353, %v1449
          %v1482 = vadd.f32 %v1354, %v1450
          %v1483 = vadd.f32 %v1355, %v1451
          %v1484 = vadd.f32 %v1356, %v1452
          %v1485 = vadd.f32 %v1357, %v1453
          %v1486 = vadd.f32 %v1358, %v1454
          %v1487 = vadd.f32 %v1359, %v1455
          %v1488 = vadd.f32 %v1360, %v1456
          %v1489 = vadd.f32 %v1361, %v1457
          %v1490 = vadd.f32 %v1362, %v1458
          %v1491 = vadd.f32 %v1363, %v1459
          %v1492 = vadd.f32 %v1364, %v1460
          %v1493 = vadd.f32 %v1365, %v1461
          %v1494 = vadd.f32 %v1366, %v1462
          %v1495 = vadd.f32 %v1367, %v1463
          %v1496 = vadd.f32 %v1368, %v1464
          %v1497 = vadd.f32 %v1369, %v1465
          %v1498 = vadd.f32 %v1370, %v1466
          %v1499 = vadd.f32 %v1371, %v1467
          %v1500 = vadd.f32 %v1372, %v1468
          %v1501 = vadd.f32 %v1373, %v1469
          %v1502 = vadd.f32 %v1374, %v1470
          %v1503 = vpack.c.bf16 %v1471, %v1311
          %v1504 = vpack.c.bf16 %v1472, %v1312
          %v1505 = vpack.c.bf16 %v1473, %v1313
          %v1506 = vpack.c.bf16 %v1474, %v1314
          %v1507 = vpack.c.bf16 %v1475, %v1315
          %v1508 = vpack.c.bf16 %v1476, %v1316
          %v1509 = vpack.c.bf16 %v1477, %v1317
          %v1510 = vpack.c.bf16 %v1478, %v1318
          %v1511 = vpack.c.bf16 %v1479, %v1319
          %v1512 = vpack.c.bf16 %v1480, %v1320
          %v1513 = vpack.c.bf16 %v1481, %v1321
          %v1514 = vpack.c.bf16 %v1482, %v1322
          %v1515 = vpack.c.bf16 %v1483, %v1323
          %v1516 = vpack.c.bf16 %v1484, %v1324
          %v1517 = vpack.c.bf16 %v1485, %v1325
          %v1518 = vpack.c.bf16 %v1486, %v1326
          %v1519 = vpack.c.bf16 %v1487, %v1327
          %v1520 = vpack.c.bf16 %v1488, %v1328
          %v1521 = vpack.c.bf16 %v1489, %v1329
          %v1522 = vpack.c.bf16 %v1490, %v1330
          %v1523 = vpack.c.bf16 %v1491, %v1331
          %v1524 = vpack.c.bf16 %v1492, %v1332
          %v1525 = vpack.c.bf16 %v1493, %v1333
          %v1526 = vpack.c.bf16 %v1494, %v1334
          %v1527 = vpack.c.bf16 %v1495, %v1335
          %v1528 = vpack.c.bf16 %v1496, %v1336
          %v1529 = vpack.c.bf16 %v1497, %v1337
          %v1530 = vpack.c.bf16 %v1498, %v1338
          %v1531 = vpack.c.bf16 %v1499, %v1339
          %v1532 = vpack.c.bf16 %v1500, %v1340
          %v1533 = vpack.c.bf16 %v1501, %v1341
          %v1534 = vpack.c.bf16 %v1502, %v1342
          %1535 = vst [vmem:[%s368] sm:$0xff] %v1503
          %1536 = vst [vmem:[%s368 + $0x8] sm:$0xff] %v1504
          %1537 = vst [vmem:[%s368 + $0x10] sm:$0xff] %v1505
          %1538 = vst [vmem:[%s368 + $0x18] sm:$0xff] %v1506
          %1539 = vst [vmem:[%s368 + $0x20] sm:$0xff] %v1507
          %1540 = vst [vmem:[%s368 + $0x28] sm:$0xff] %v1508
          %1541 = vst [vmem:[%s368 + $0x30] sm:$0xff] %v1509
          %1542 = vst [vmem:[%s368 + $0x38] sm:$0xff] %v1510
          %1543 = vst [vmem:[%s368 + $0x40] sm:$0xff] %v1511
          %1544 = vst [vmem:[%s368 + $0x48] sm:$0xff] %v1512
          %1545 = vst [vmem:[%s368 + $0x50] sm:$0xff] %v1513
          %1546 = vst [vmem:[%s368 + $0x58] sm:$0xff] %v1514
          %1547 = vst [vmem:[%s368 + $0x60] sm:$0xff] %v1515
          %1548 = vst [vmem:[%s368 + $0x68] sm:$0xff] %v1516
          %1549 = vst [vmem:[%s368 + $0x70] sm:$0xff] %v1517
          %1550 = vst [vmem:[%s368 + $0x78] sm:$0xff] %v1518
          %1551 = vst [vmem:[%s368 + $0x80] sm:$0xff] %v1519
          %1552 = vst [vmem:[%s368 + $0x88] sm:$0xff] %v1520
          %1553 = vst [vmem:[%s368 + $0x90] sm:$0xff] %v1521
          %1554 = vst [vmem:[%s368 + $0x98] sm:$0xff] %v1522
          %1555 = vst [vmem:[%s368 + $0xa0] sm:$0xff] %v1523
          %1556 = vst [vmem:[%s368 + $0xa8] sm:$0xff] %v1524
          %1557 = vst [vmem:[%s368 + $0xb0] sm:$0xff] %v1525
          %1558 = vst [vmem:[%s368 + $0xb8] sm:$0xff] %v1526
          %1559 = vst [vmem:[%s368 + $0xc0] sm:$0xff] %v1527
          %1560 = vst [vmem:[%s368 + $0xc8] sm:$0xff] %v1528
          %1561 = vst [vmem:[%s368 + $0xd0] sm:$0xff] %v1529
          %1562 = vst [vmem:[%s368 + $0xd8] sm:$0xff] %v1530
          %1563 = vst [vmem:[%s368 + $0xe0] sm:$0xff] %v1531
          %1564 = vst [vmem:[%s368 + $0xe8] sm:$0xff] %v1532
          %1565 = vst [vmem:[%s368 + $0xf0] sm:$0xff] %v1533
          %1566 = vst [vmem:[%s368 + $0xf8] sm:$0xff] %v1534
        $region56: #{tpu_custom_call.1} parent=35 // pred_fallthru
          _
        %p1567 = scmp.ge.s32.totalorder %s34, 2
        // Predicated region
        $region57: #{tpu_custom_call.1} parent=35 // pred_check
          %p1568 = pneg %p1567
        $region58: #{tpu_custom_call.1} parent=35 // pred_check_branch
          %1570 = sbr.rel (%p1568) target = $region60
        $region59: #{tpu_custom_call.1} parent=35 // pred_region
          %v1571 = vpack.c.bf16 %v1036, %v858
          %v1572 = vpack.c.bf16 %v1038, %v860
          %v1573 = vpack.c.bf16 %v1041, %v863
          %v1574 = vpack.c.bf16 %v1043, %v865
          %v1575 = vpack.c.bf16 %v1046, %v868
          %v1576 = vpack.c.bf16 %v1048, %v870
          %v1577 = vpack.c.bf16 %v1051, %v873
          %v1578 = vpack.c.bf16 %v1053, %v875
          %v1579 = vpack.c.bf16 %v1056, %v878
          %v1580 = vpack.c.bf16 %v1058, %v880
          %v1581 = vpack.c.bf16 %v1061, %v883
          %v1582 = vpack.c.bf16 %v1063, %v885
          %v1583 = vpack.c.bf16 %v1066, %v888
          %v1584 = vpack.c.bf16 %v1068, %v890
          %v1585 = vpack.c.bf16 %v1071, %v893
          %v1586 = vpack.c.bf16 %v1073, %v895
          %v1587 = vpack.c.bf16 %v1076, %v898
          %v1588 = vpack.c.bf16 %v1078, %v900
          %v1589 = vpack.c.bf16 %v1081, %v903
          %v1590 = vpack.c.bf16 %v1083, %v905
          %v1591 = vpack.c.bf16 %v1086, %v908
          %v1592 = vpack.c.bf16 %v1088, %v910
          %v1593 = vpack.c.bf16 %v1091, %v913
          %v1594 = vpack.c.bf16 %v1093, %v915
          %v1595 = vpack.c.bf16 %v1096, %v918
          %v1596 = vpack.c.bf16 %v1098, %v920
          %v1597 = vpack.c.bf16 %v1101, %v923
          %v1598 = vpack.c.bf16 %v1103, %v925
          %v1599 = vpack.c.bf16 %v1106, %v928
          %v1600 = vpack.c.bf16 %v1108, %v930
          %v1601 = vpack.c.bf16 %v1111, %v933
          %v1602 = vpack.c.bf16 %v1113, %v935
          %1603 = vst [vmem:[%s368] sm:$0xff] %v1571
          %1604 = vst [vmem:[%s368 + $0x8] sm:$0xff] %v1572
          %1605 = vst [vmem:[%s368 + $0x10] sm:$0xff] %v1573
          %1606 = vst [vmem:[%s368 + $0x18] sm:$0xff] %v1574
          %1607 = vst [vmem:[%s368 + $0x20] sm:$0xff] %v1575
          %1608 = vst [vmem:[%s368 + $0x28] sm:$0xff] %v1576
          %1609 = vst [vmem:[%s368 + $0x30] sm:$0xff] %v1577
          %1610 = vst [vmem:[%s368 + $0x38] sm:$0xff] %v1578
          %1611 = vst [vmem:[%s368 + $0x40] sm:$0xff] %v1579
          %1612 = vst [vmem:[%s368 + $0x48] sm:$0xff] %v1580
          %1613 = vst [vmem:[%s368 + $0x50] sm:$0xff] %v1581
          %1614 = vst [vmem:[%s368 + $0x58] sm:$0xff] %v1582
          %1615 = vst [vmem:[%s368 + $0x60] sm:$0xff] %v1583
          %1616 = vst [vmem:[%s368 + $0x68] sm:$0xff] %v1584
          %1617 = vst [vmem:[%s368 + $0x70] sm:$0xff] %v1585
          %1618 = vst [vmem:[%s368 + $0x78] sm:$0xff] %v1586
          %1619 = vst [vmem:[%s368 + $0x80] sm:$0xff] %v1587
          %1620 = vst [vmem:[%s368 + $0x88] sm:$0xff] %v1588
          %1621 = vst [vmem:[%s368 + $0x90] sm:$0xff] %v1589
          %1622 = vst [vmem:[%s368 + $0x98] sm:$0xff] %v1590
          %1623 = vst [vmem:[%s368 + $0xa0] sm:$0xff] %v1591
          %1624 = vst [vmem:[%s368 + $0xa8] sm:$0xff] %v1592
          %1625 = vst [vmem:[%s368 + $0xb0] sm:$0xff] %v1593
          %1626 = vst [vmem:[%s368 + $0xb8] sm:$0xff] %v1594
          %1627 = vst [vmem:[%s368 + $0xc0] sm:$0xff] %v1595
          %1628 = vst [vmem:[%s368 + $0xc8] sm:$0xff] %v1596
          %1629 = vst [vmem:[%s368 + $0xd0] sm:$0xff] %v1597
          %1630 = vst [vmem:[%s368 + $0xd8] sm:$0xff] %v1598
          %1631 = vst [vmem:[%s368 + $0xe0] sm:$0xff] %v1599
          %1632 = vst [vmem:[%s368 + $0xe8] sm:$0xff] %v1600
          %1633 = vst [vmem:[%s368 + $0xf0] sm:$0xff] %v1601
          %1634 = vst [vmem:[%s368 + $0xf8] sm:$0xff] %v1602
        $region60: #{tpu_custom_call.1} parent=35 // pred_fallthru
          _
        %s1635 = sand.u32 %s164, 1
        %s1636 = scalar_lea.sflag [#allocation4], %s1635
        %s1637 = sand.u32 %s164, 1
        %s1638 = smul.addr %s1637, 256
        %s1639 = scalar_lea.vmem [#allocation10], %s1638
        // Predicated region
        $region61: #{tpu_custom_call.1} parent=35 // pred_check
          %p1640 = pneg %p174
        $region62: #{tpu_custom_call.1} parent=35 // pred_check_branch
          %1642 = sbr.rel (%p1640) target = $region64
        $region63: #{tpu_custom_call.1} parent=35 // pred_region
          %s1643 = smul.u32 32, %s33
          %s1644 = smul.u32 2, %s34
          %1646 = vsyncadd %s1636, 0
          %s1647 = smul.addr %s1643, 6
          %s1648 = sadd.s32 %s1644, %s1647
          %s1649 = smul.addr %s32, 384
          %s1650 = sadd.s32 %s1648, %s1649
          %s1651 = smul.addr %s1650, 4
          %s1652 = scalar_lea.hbm %s4, %s1651
          %s1653 = sshll.u32 %s1639, 4
          %s1654 = int_to_ptr.vmem [resolvable:$true] %s1653
          %s1655 = sshll.u32 %s1652, 4
          %s1656 = int_to_ptr.hbm [resolvable:$true] %s1655
          %1661 = dma.vmem_to_hbm [thread:$0]  %s1654, 4096, %s1656, %s1636, 128, 384, 8
        $region64: #{tpu_custom_call.1} parent=35 // pred_fallthru
          _
      $region36: #{tpu_custom_call.1} parent=5 // pred_fallthru
        _
      %p1662 = scmp.le.s32.totalorder 2, %s22
      // Predicated region
      $region65: #{tpu_custom_call.1} parent=5 // pred_check
        %p1663 = pneg %p1662
      $region66: #{tpu_custom_call.1} parent=5 // pred_check_branch
        %1665 = sbr.rel (%p1663) target = $region68
      $region67: #{tpu_custom_call.1} parent=5 // pred_region
        %s1666 = ssub.s32 %s22, 2
        // Predicated region
        $region69: #{tpu_custom_call.1} parent=67 // pred_check
          %p1667 = pneg %p180
        $region70: #{tpu_custom_call.1} parent=67 // pred_check_branch
          %1669 = sbr.rel (%p1667) target = $region72
        $region71: #{tpu_custom_call.1} parent=67 // pred_region
          %s1670 = sand.u32 %s165, 1
          %s1671 = scalar_lea.sflag [#allocation4], %s1670
          %s1672 = sand.u32 %s165, 1
          %s1673 = smul.addr %s1672, 256
          %s1674 = scalar_lea.vmem [#allocation10], %s1673
          %1676 = dma.done %s1671, 4096
        $region72: #{tpu_custom_call.1} parent=67 // pred_fallthru
          _
      $region68: #{tpu_custom_call.1} parent=5 // pred_fallthru
        _
    $region6: #{tpu_custom_call.1} parent=1 // loop_footer
      %s26 = sadd.s32 1, %s22
    $region7: #{tpu_custom_call.1} parent=1 // loop_footer_branch
      %21 = sbr.rel target = $region3
    $region8: #{tpu_custom_call.1} parent=1 // loop_exit
      _
    %1677 = vsyncpa [#allocation3], 1
    %s1678 = scalar_lea.sflag [#allocation3], 1
    %1679 = vsyncpa %s1678, 1
    %1680 = vsyncpa [#allocation6], 1
    %s1681 = scalar_lea.sflag [#allocation6], 1
    %1682 = vsyncpa %s1681, 1
    %1683 = vsyncpa [#allocation9], 1
    %s1684 = scalar_lea.sflag [#allocation9], 1
    %1685 = vsyncpa %s1684, 1
    %1686 = vsyncpa [#allocation4], 1
    %s1687 = scalar_lea.sflag [#allocation4], 1
    %1688 = vsyncpa %s1687, 1

</llo_original>
